<compile_context>
chip_gen: v7x
topology: tpu7x:2x2x1
jax: 0.10.0
libtpu: 0.0.40
codegen_flags: <defaults>
</compile_context>

<pallas_src>
import functools

import jax
import jax.numpy as jnp
from jax import lax
from jax.experimental import pallas as pl
from jax.experimental.pallas import tpu as pltpu

_BN_EPS = 1e-5
_HEAD_PAD = 128   # lane-padded width of the fused [mu_4 | logvar_4] head


# ----------------------------------------------------------------------------
# Fused kernel
# ----------------------------------------------------------------------------
def _fused_kernel(x_ref, w_stack_ref, s_enc_ref, w1_ref, s1_ref,
                  w_head_ref, s_head_ref, o_ref, acc_ref,
                  *, rna_dim, atac_dim, block_rows, k_tile, approx_recip):
    bt = block_rows
    k = pl.program_id(1)
    nk = pl.num_programs(1)

    # ---- init: accumulator starts at the folded (bias+BN) shift per modality.
    @pl.when(k == 0)
    def _():
        hp = acc_ref.shape[1]
        acc_ref[0:bt, :] = jnp.broadcast_to(s_enc_ref[0:1, :], (bt, hp))
        acc_ref[bt:, :] = jnp.broadcast_to(s_enc_ref[1:2, :], (bt, hp))

    # ---- layer 1 (modality encoders), K-tiled over the stacked input columns.
    xb = x_ref[...]                                             # (bt, k_tile) f32
    col = k * k_tile + lax.broadcasted_iota(jnp.int32, xb.shape, 1)
    x_rna = jnp.where(col < rna_dim, xb, 0.0)
    x_atac = jnp.where(jnp.logical_and(col >= rna_dim,
                                       col < rna_dim + atac_dim), xb, 0.0)
    wk = w_stack_ref[...]                                       # (k_tile, Hp)
    cdt = wk.dtype
    acc_ref[0:bt, :] = acc_ref[0:bt, :] + jnp.dot(
        x_rna.astype(cdt), wk, preferred_element_type=jnp.float32)
    acc_ref[bt:, :] = acc_ref[bt:, :] + jnp.dot(
        x_atac.astype(cdt), wk, preferred_element_type=jnp.float32)

    # ---- finalize: shared VAE encoder on stacked 2*bt rows + PoE on latent 4.
    @pl.when(k == nk - 1)
    def _():
        e = jnp.maximum(acc_ref[...], 0.0)                       # (2bt, Hp)
        h1 = jnp.maximum(
            jnp.dot(e.astype(w1_ref.dtype), w1_ref[...],
                    preferred_element_type=jnp.float32) + s1_ref[...], 0.0)
        head = jnp.dot(h1.astype(w_head_ref.dtype), w_head_ref[...],
                       preferred_element_type=jnp.float32) + s_head_ref[...]
        mu = head[:, 0:1]                                        # (2bt, 1)
        lv = head[:, 1:2]
        mu_r, mu_a = mu[0:bt], mu[bt:]
        lv_r, lv_a = lv[0:bt], lv[bt:]
        # product-of-experts on a single coordinate, overflow-safe:
        #   w_r = prec_r / (prec_r + prec_a) = 1 / (1 + exp(lv_r - lv_a))
        w_r = pl.reciprocal(1.0 + jnp.exp(lv_r - lv_a), approx=approx_recip)
        joint = w_r * mu_r + (1.0 - w_r) * mu_a                  # (bt, 1)
        o_ref[...] = joint.astype(o_ref.dtype)


def _choose_k_tile(d_total):
    if d_total % 128 != 0:
        return d_total          # single K step (small-dims path)
    for t in (512, 384, 256, 128):
        if d_total % t == 0:
            return t
    return d_total


def explain_model_forward(folded, x, dims, *, block_rows=None, k_tile=None,
                          approx_recip=True):
    """explainModel(mode='joint_share').forward -> joint_mu[:, 4], shape (B,)."""
    rna_dim, atac_dim, batch_dims = dims
    B, d_total = x.shape
    assert d_total == rna_dim + atac_dim + batch_dims
    assert folded['w_stack'].shape[0] == d_total

    if block_rows is None:
        block_rows = 128 if B % 128 == 0 else B
    assert B % block_rows == 0
    if k_tile is None:
        k_tile = _choose_k_tile(d_total)
    assert d_total % k_tile == 0

    hp = folded['w_stack'].shape[1]
    h1_dim = folded['w1'].shape[1]
    grid = (B // block_rows, d_total // k_tile)

    kernel = functools.partial(
        _fused_kernel, rna_dim=rna_dim, atac_dim=atac_dim,
        block_rows=block_rows, k_tile=k_tile, approx_recip=approx_recip)

    out = pl.pallas_call(
        kernel,
        out_shape=jax.ShapeDtypeStruct((B, 1), jnp.float32),
        grid_spec=pltpu.PrefetchScalarGridSpec(
            num_scalar_prefetch=0,
            grid=grid,
            in_specs=[
                pl.BlockSpec((block_rows, k_tile), lambda i, k: (i, k)),  # x
                pl.BlockSpec((k_tile, hp), lambda i, k: (k, 0)),          # w_stack
                pl.BlockSpec((2, hp), lambda i, k: (0, 0)),               # s_enc
                pl.BlockSpec((hp, h1_dim), lambda i, k: (0, 0)),          # w1
                pl.BlockSpec((1, h1_dim), lambda i, k: (0, 0)),           # s1
                pl.BlockSpec((h1_dim, _HEAD_PAD), lambda i, k: (0, 0)),   # w_head
                pl.BlockSpec((1, _HEAD_PAD), lambda i, k: (0, 0)),        # s_head
            ],
            out_specs=pl.BlockSpec((block_rows, 1), lambda i, k: (i, 0)),
            scratch_shapes=[pltpu.VMEM((2 * block_rows, hp), jnp.float32)],
        ),
        compiler_params=pltpu.CompilerParams(
            dimension_semantics=("parallel", "arbitrary"),
            vmem_limit_bytes=32 * 1024 * 1024),
    )(x, folded['w_stack'], folded['s_enc'], folded['w1'], folded['s1'],
      folded['w_head'], folded['s_head'])

    # (B, 1) -> (B,) is a metadata-only reshape (no extra XLA copy op).
    return out.reshape(B)


# ----------------------------------------------------------------------------
# Parameter construction (mirrors scMulti._initialize_weights) and BN folding
# ----------------------------------------------------------------------------
def make_linear_bn(key, fan_in, fan_out):
    # nn.init.kaiming_normal_(weight, nonlinearity='relu'); bias = 0.
    # Weight stored transposed vs PyTorch: (in_features, out_features).
    std = (2.0 / fan_in) ** 0.5
    w = std * jax.random.normal(key, (fan_in, fan_out), jnp.float32)
    b = jnp.zeros((fan_out,), jnp.float32)
    # BatchNorm1d parameters / running stats at PyTorch defaults (eval mode).
    return dict(w=w, b=b,
                gamma=jnp.ones((fan_out,), jnp.float32),
                beta=jnp.zeros((fan_out,), jnp.float32),
                mean=jnp.zeros((fan_out,), jnp.float32),
                var=jnp.ones((fan_out,), jnp.float32))


def _fold(p):
    scale = p['gamma'] / jnp.sqrt(p['var'] + _BN_EPS)
    w = p['w'] * scale[None, :]
    s = ((p['b'] - p['mean']) * scale + p['beta'])[None, :]
    return w, s


def fold_params(params, latent_col, dims, dot_dtype=jnp.bfloat16):
    """Fold BN into (W, shift), lane-pad, stack layer-1, pre-slice the head."""
    rna_dim, atac_dim, batch_dims = dims
    d_total = rna_dim + atac_dim + batch_dims

    w_rna, s_rna = _fold(params['rna_enc'])      # (rna, H),  (1, H)
    w_atac, s_atac = _fold(params['atac_enc'])   # (atac, H), (1, H)
    w1, s1 = _fold(params['share_l1'])           # (H, 256),  (1, 256)
    w_mu, s_mu = _fold(params['share_mu'])       # (256, L)
    w_lv, s_lv = _fold(params['share_lv'])

    h = w_rna.shape[1]
    hp = -(-h // 128) * 128                      # lane-pad H (64 -> 128)
    h1_dim = w1.shape[1]

    # Stacked layer-1 weight over the full input columns (rna | atac | batch);
    # batch-id rows stay zero (batch_id is unused on the joint_share path).
    w_stack = jnp.zeros((d_total, hp), jnp.float32)
    w_stack = w_stack.at[:rna_dim, :h].set(w_rna)
    w_stack = w_stack.at[rna_dim:rna_dim + atac_dim, :h].set(w_atac)
    s_enc = jnp.zeros((2, hp), jnp.float32)
    s_enc = s_enc.at[0, :h].set(s_rna[0])
    s_enc = s_enc.at[1, :h].set(s_atac[0])

    w1p = jnp.zeros((hp, h1_dim), jnp.float32).at[:h, :].set(w1)

    # mu / logvar heads pre-sliced to the single consumed latent column and
    # packed lane-dense: col 0 = mu_4, col 1 = logvar_4, rest zero.
    c = latent_col
    w_head = jnp.zeros((h1_dim, _HEAD_PAD), jnp.float32)
    w_head = w_head.at[:, 0].set(w_mu[:, c])
    w_head = w_head.at[:, 1].set(w_lv[:, c])
    s_head = jnp.zeros((1, _HEAD_PAD), jnp.float32)
    s_head = s_head.at[0, 0].set(s_mu[0, c])
    s_head = s_head.at[0, 1].set(s_lv[0, c])

    return dict(w_stack=w_stack.astype(dot_dtype), s_enc=s_enc,
                w1=w1p.astype(dot_dtype), s1=s1,
                w_head=w_head.astype(dot_dtype), s_head=s_head)


# ----------------------------------------------------------------------------
# Pure-JAX reference (mirrors the PyTorch graph, unfolded)
# ----------------------------------------------------------------------------
def reference_forward(params, x, dims, latent_col):
    hi = lax.Precision.HIGHEST

    def lin_bn(p, h, relu):
        y = jnp.dot(h, p['w'], precision=hi) + p['b']
        y = (y - p['mean']) / jnp.sqrt(p['var'] + _BN_EPS) * p['gamma'] + p['beta']
        return jnp.maximum(y, 0.0) if relu else y

    rna_dim, atac_dim, _ = dims
    er = lin_bn(params['rna_enc'], x[:, :rna_dim], True)
    ea = lin_bn(params['atac_enc'], x[:, rna_dim:rna_dim + atac_dim], True)

    def share(h):
        h1 = lin_bn(params['share_l1'], h, True)
        return (lin_bn(params['share_mu'], h1, False),
                lin_bn(params['share_lv'], h1, False))

    mu_r, lv_r = share(er)
    mu_a, lv_a = share(ea)
    p_r, p_a = 1.0 / jnp.exp(lv_r), 1.0 / jnp.exp(lv_a)     # as in product_of_experts
    poe_var = 1.0 / (p_r + p_a)
    joint_mu = poe_var * (p_r * mu_r + p_a * mu_a)
    return joint_mu[:, latent_col]


# ----------------------------------------------------------------------------
# Driver
# ----------------------------------------------------------------------------
if __name__ == "__main__":
    # Small but MXU-friendly shapes (perf review: B a multiple of 128); the
    # grid is (2 row tiles, 2 K tiles) so both grid axes are exercised.
    B = 256
    RNA_DIM, ATAC_DIM, BATCH_DIMS = 120, 128, 8   # d_total = 256
    H = 64            # encoder_hidden_dims = [64]
    HID_VAE = 256     # hardcoded [256] inside scMulti's ModalVAEEncoder
    LATENT = 16       # latent_dim (must be > 4 for joint_mu[:, 4])
    LATENT_COL = 4

    root = jax.random.PRNGKey(0)
    keys = jax.random.split(root, 6)
    params = {
        'rna_enc': make_linear_bn(keys[0], RNA_DIM, H),
        'atac_enc': make_linear_bn(keys[1], ATAC_DIM, H),
        'share_l1': make_linear_bn(keys[2], H, HID_VAE),
        'share_mu': make_linear_bn(keys[3], HID_VAE, LATENT),
        'share_lv': make_linear_bn(keys[4], HID_VAE, LATENT),
    }
    x = jax.random.normal(keys[5], (B, RNA_DIM + ATAC_DIM + BATCH_DIMS),
                          jnp.float32)
    dims = (RNA_DIM, ATAC_DIM, BATCH_DIMS)

    ref = reference_forward(params, x, dims, LATENT_COL)

    # 1) f32 weights + exact reciprocal: tight validation of structure/folding.
    folded32 = fold_params(params, LATENT_COL, dims, dot_dtype=jnp.float32)
    fwd_check = jax.jit(functools.partial(
        explain_model_forward, dims=dims, k_tile=128, approx_recip=False))
    out32 = jax.block_until_ready(fwd_check(folded32, x))
    assert out32.shape == (B,) and out32.dtype == jnp.float32
    assert bool(jnp.all(jnp.isfinite(out32)))
    assert bool(jnp.allclose(out32, ref, rtol=1e-3, atol=1e-3))

    # 2) bf16 MXU operands + approx reciprocal (production config per review):
    #    tolerance reflects bf16 rounding of three chained matmuls only.
    folded16 = fold_params(params, LATENT_COL, dims, dot_dtype=jnp.bfloat16)
    fwd_fast = jax.jit(functools.partial(
        explain_model_forward, dims=dims, k_tile=128, approx_recip=True))
    out16 = jax.block_until_ready(fwd_fast(folded16, x))
    assert out16.shape == (B,) and bool(jnp.all(jnp.isfinite(out16)))
    assert bool(jnp.allclose(out16, ref, rtol=5e-2, atol=5e-2))

    print("KERNEL_OK")
</pallas_src>

<mosaic_0001>
module attributes {stable_mosaic.version = 11 : i64} {
  func.func @_fused_kernel(%arg0: i32, %arg1: i32, %arg2: memref<128x128xf32, #tpu.memory_space<vmem>>, %arg3: memref<128x128xf32, #tpu.memory_space<vmem>>, %arg4: memref<2x128xf32, #tpu.memory_space<vmem>>, %arg5: memref<128x256xf32, #tpu.memory_space<vmem>>, %arg6: memref<1x256xf32, #tpu.memory_space<vmem>>, %arg7: memref<256x128xf32, #tpu.memory_space<vmem>>, %arg8: memref<1x128xf32, #tpu.memory_space<vmem>>, %arg9: memref<128x1xf32, #tpu.memory_space<vmem>>, %arg10: memref<256x128xf32, #tpu.memory_space<vmem>>) attributes {dimension_semantics = [#tpu.dimension_semantics<parallel>, #tpu.dimension_semantics<arbitrary>], iteration_bounds = array<i64: 2, 2>, scalar_prefetch = 0 : i64, scratch_operands = 1 : i64, tpu.core_type = #tpu.core_type<tc>, window_params = [{transform_indices = @transform_0, window_bounds = array<i64: 128, 128>}, {transform_indices = @transform_1, window_bounds = array<i64: 128, 128>}, {pipeline_mode = #tpu.pipeline_mode<synchronous>, transform_indices = @transform_2, window_bounds = array<i64: 2, 128>}, {pipeline_mode = #tpu.pipeline_mode<synchronous>, transform_indices = @transform_3, window_bounds = array<i64: 128, 256>}, {pipeline_mode = #tpu.pipeline_mode<synchronous>, transform_indices = @transform_4, window_bounds = array<i64: 1, 256>}, {pipeline_mode = #tpu.pipeline_mode<synchronous>, transform_indices = @transform_5, window_bounds = array<i64: 256, 128>}, {pipeline_mode = #tpu.pipeline_mode<synchronous>, transform_indices = @transform_6, window_bounds = array<i64: 1, 128>}, {transform_indices = @transform_7, window_bounds = array<i64: 128, 1>}]} {
    %c0_i32 = arith.constant 0 : i32
    %0 = arith.cmpi eq, %arg1, %c0_i32 : i32
    %1 = arith.extui %0 : i1 to i32
    %c0_i32_0 = arith.constant 0 : i32
    %2 = arith.cmpi ne, %1, %c0_i32_0 : i32
    scf.if %2 {
      %c0_16 = arith.constant 0 : index
      %c0_17 = arith.constant 0 : index
      %31 = vector.load %arg4[%c0_16, %c0_17] : memref<2x128xf32, #tpu.memory_space<vmem>>, vector<1x128xf32>
      %32 = vector.shape_cast %31 : vector<1x128xf32> to vector<1x128xf32>
      %33 = vector.broadcast %32 : vector<1x128xf32> to vector<128x128xf32>
      %c0_18 = arith.constant 0 : index
      %c0_19 = arith.constant 0 : index
      %34 = vector.load %arg10[%c0_18, %c0_19] : memref<256x128xf32, #tpu.memory_space<vmem>>, vector<128x128xf32>
      tpu.vector_store %arg10[%c0_18, %c0_19], %33 {strides = array<i32>} : memref<256x128xf32, #tpu.memory_space<vmem>>, vector<128x128xf32>,
      %c1 = arith.constant 1 : index
      %c0_20 = arith.constant 0 : index
      %35 = vector.load %arg4[%c1, %c0_20] : memref<2x128xf32, #tpu.memory_space<vmem>>, vector<1x128xf32>
      %36 = vector.shape_cast %35 : vector<1x128xf32> to vector<1x128xf32>
      %37 = vector.broadcast %36 : vector<1x128xf32> to vector<128x128xf32>
      %c128_21 = arith.constant 128 : index
      %c0_22 = arith.constant 0 : index
      %38 = vector.load %arg10[%c128_21, %c0_22] : memref<256x128xf32, #tpu.memory_space<vmem>>, vector<128x128xf32>
      tpu.vector_store %arg10[%c128_21, %c0_22], %37 {strides = array<i32>} : memref<256x128xf32, #tpu.memory_space<vmem>>, vector<128x128xf32>,
    } else {
    }
    %c0 = arith.constant 0 : index
    %c0_1 = arith.constant 0 : index
    %3 = vector.load %arg2[%c0, %c0_1] : memref<128x128xf32, #tpu.memory_space<vmem>>, vector<128x128xf32>
    %c128_i32 = arith.constant 128 : i32
    %4 = arith.muli %arg1, %c128_i32 : i32
    %5 = tpu.iota {dimensions = array<i32: 1>} : vector<128x128xi32>
    %6 = vector.broadcast %4 : i32 to vector<128x128xi32>
    %7 = arith.addi %6, %5 : vector<128x128xi32>
    %c120_i32 = arith.constant 120 : i32
    %8 = vector.broadcast %c120_i32 : i32 to vector<128x128xi32>
    %9 = arith.cmpi slt, %7, %8 : vector<128x128xi32>
    %cst = arith.constant 0.000000e+00 : f32
    %10 = vector.broadcast %cst : f32 to vector<128x128xf32>
    %11 = arith.select %9, %3, %10 : vector<128x128xi1>, vector<128x128xf32>
    %c120_i32_2 = arith.constant 120 : i32
    %12 = vector.broadcast %c120_i32_2 : i32 to vector<128x128xi32>
    %13 = arith.cmpi sge, %7, %12 : vector<128x128xi32>
    %c248_i32 = arith.constant 248 : i32
    %14 = vector.broadcast %c248_i32 : i32 to vector<128x128xi32>
    %15 = arith.cmpi slt, %7, %14 : vector<128x128xi32>
    %16 = arith.andi %13, %15 : vector<128x128xi1>
    %cst_3 = arith.constant 0.000000e+00 : f32
    %17 = vector.broadcast %cst_3 : f32 to vector<128x128xf32>
    %18 = arith.select %16, %3, %17 : vector<128x128xi1>, vector<128x128xf32>
    %c0_4 = arith.constant 0 : index
    %c0_5 = arith.constant 0 : index
    %19 = vector.load %arg3[%c0_4, %c0_5] : memref<128x128xf32, #tpu.memory_space<vmem>>, vector<128x128xf32>
    %c0_6 = arith.constant 0 : index
    %c0_7 = arith.constant 0 : index
    %20 = vector.load %arg10[%c0_6, %c0_7] : memref<256x128xf32, #tpu.memory_space<vmem>>, vector<128x128xf32>
    %cst_8 = arith.constant dense<0.000000e+00> : vector<128x128xf32>
    %21 = tpu.matmul %11, %19, %cst_8 {dimension_numbers = #tpu.dot_dimension_numbers<[1], [0], [0], [1], [0, 0, 1, 1], [], []>} : vector<128x128xf32>, vector<128x128xf32>, vector<128x128xf32> -> vector<128x128xf32>
    %22 = arith.addf %20, %21 : vector<128x128xf32>
    %c0_9 = arith.constant 0 : index
    %c0_10 = arith.constant 0 : index
    %23 = vector.load %arg10[%c0_9, %c0_10] : memref<256x128xf32, #tpu.memory_space<vmem>>, vector<128x128xf32>
    tpu.vector_store %arg10[%c0_9, %c0_10], %22 {strides = array<i32>} : memref<256x128xf32, #tpu.memory_space<vmem>>, vector<128x128xf32>,
    %c128 = arith.constant 128 : index
    %c0_11 = arith.constant 0 : index
    %24 = vector.load %arg10[%c128, %c0_11] : memref<256x128xf32, #tpu.memory_space<vmem>>, vector<128x128xf32>
    %cst_12 = arith.constant dense<0.000000e+00> : vector<128x128xf32>
    %25 = tpu.matmul %18, %19, %cst_12 {dimension_numbers = #tpu.dot_dimension_numbers<[1], [0], [0], [1], [0, 0, 1, 1], [], []>} : vector<128x128xf32>, vector<128x128xf32>, vector<128x128xf32> -> vector<128x128xf32>
    %26 = arith.addf %24, %25 : vector<128x128xf32>
    %c128_13 = arith.constant 128 : index
    %c0_14 = arith.constant 0 : index
    %27 = vector.load %arg10[%c128_13, %c0_14] : memref<256x128xf32, #tpu.memory_space<vmem>>, vector<128x128xf32>
    tpu.vector_store %arg10[%c128_13, %c0_14], %26 {strides = array<i32>} : memref<256x128xf32, #tpu.memory_space<vmem>>, vector<128x128xf32>,
    %c1_i32 = arith.constant 1 : i32
    %28 = arith.cmpi eq, %arg1, %c1_i32 : i32
    %29 = arith.extui %28 : i1 to i32
    %c0_i32_15 = arith.constant 0 : i32
    %30 = arith.cmpi ne, %29, %c0_i32_15 : i32
    scf.if %30 {
      %c0_16 = arith.constant 0 : index
      %c0_17 = arith.constant 0 : index
      %31 = vector.load %arg10[%c0_16, %c0_17] : memref<256x128xf32, #tpu.memory_space<vmem>>, vector<256x128xf32>
      %cst_18 = arith.constant 0.000000e+00 : f32
      %32 = vector.broadcast %cst_18 : f32 to vector<256x128xf32>
      %33 = arith.maximumf %31, %32 : vector<256x128xf32>
      %c0_19 = arith.constant 0 : index
      %c0_20 = arith.constant 0 : index
      %34 = vector.load %arg5[%c0_19, %c0_20] : memref<128x256xf32, #tpu.memory_space<vmem>>, vector<128x256xf32>
      %cst_21 = arith.constant dense<0.000000e+00> : vector<256x256xf32>
      %35 = tpu.matmul %33, %34, %cst_21 {dimension_numbers = #tpu.dot_dimension_numbers<[1], [0], [0], [1], [0, 0, 1, 1], [], []>} : vector<256x128xf32>, vector<128x256xf32>, vector<256x256xf32> -> vector<256x256xf32>
      %c0_22 = arith.constant 0 : index
      %c0_23 = arith.constant 0 : index
      %36 = vector.load %arg6[%c0_22, %c0_23] : memref<1x256xf32, #tpu.memory_space<vmem>>, vector<1x256xf32>
      %37 = vector.broadcast %36 : vector<1x256xf32> to vector<256x256xf32>
      %38 = arith.addf %35, %37 : vector<256x256xf32>
      %cst_24 = arith.constant 0.000000e+00 : f32
      %39 = vector.broadcast %cst_24 : f32 to vector<256x256xf32>
      %40 = arith.maximumf %38, %39 : vector<256x256xf32>
      %c0_25 = arith.constant 0 : index
      %c0_26 = arith.constant 0 : index
      %41 = vector.load %arg7[%c0_25, %c0_26] : memref<256x128xf32, #tpu.memory_space<vmem>>, vector<256x128xf32>
      %cst_27 = arith.constant dense<0.000000e+00> : vector<256x128xf32>
      %42 = tpu.matmul %40, %41, %cst_27 {dimension_numbers = #tpu.dot_dimension_numbers<[1], [0], [0], [1], [0, 0, 1, 1], [], []>} : vector<256x256xf32>, vector<256x128xf32>, vector<256x128xf32> -> vector<256x128xf32>
      %c0_28 = arith.constant 0 : index
      %c0_29 = arith.constant 0 : index
      %43 = vector.load %arg8[%c0_28, %c0_29] : memref<1x128xf32, #tpu.memory_space<vmem>>, vector<1x128xf32>
      %44 = vector.broadcast %43 : vector<1x128xf32> to vector<256x128xf32>
      %45 = arith.addf %42, %44 : vector<256x128xf32>
      %46 = vector.extract_strided_slice %45 {offsets = [0, 0], sizes = [256, 1], strides = [1, 1]} : vector<256x128xf32> to vector<256x1xf32>
      %47 = vector.extract_strided_slice %45 {offsets = [0, 1], sizes = [256, 1], strides = [1, 1]} : vector<256x128xf32> to vector<256x1xf32>
      %48 = vector.extract_strided_slice %46 {offsets = [0, 0], sizes = [128, 1], strides = [1, 1]} : vector<256x1xf32> to vector<128x1xf32>
      %49 = vector.extract_strided_slice %46 {offsets = [128, 0], sizes = [128, 1], strides = [1, 1]} : vector<256x1xf32> to vector<128x1xf32>
      %50 = vector.extract_strided_slice %47 {offsets = [0, 0], sizes = [128, 1], strides = [1, 1]} : vector<256x1xf32> to vector<128x1xf32>
      %51 = vector.extract_strided_slice %47 {offsets = [128, 0], sizes = [128, 1], strides = [1, 1]} : vector<256x1xf32> to vector<128x1xf32>
      %52 = arith.subf %50, %51 : vector<128x1xf32>
      %53 = math.exp %52 : vector<128x1xf32>
      %cst_30 = arith.constant 1.000000e+00 : f32
      %54 = vector.broadcast %cst_30 : f32 to vector<128x1xf32>
      %55 = arith.addf %54, %53 : vector<128x1xf32>
      %56 = tpu.reciprocal %55 : vector<128x1xf32> -> vector<128x1xf32>
      %57 = arith.mulf %56, %48 : vector<128x1xf32>
      %cst_31 = arith.constant 1.000000e+00 : f32
      %58 = vector.broadcast %cst_31 : f32 to vector<128x1xf32>
      %59 = arith.subf %58, %56 : vector<128x1xf32>
      %60 = arith.mulf %59, %49 : vector<128x1xf32>
      %61 = arith.addf %57, %60 : vector<128x1xf32>
      %c0_32 = arith.constant 0 : index
      %c0_33 = arith.constant 0 : index
      %62 = vector.load %arg9[%c0_32, %c0_33] : memref<128x1xf32, #tpu.memory_space<vmem>>, vector<128x1xf32>
      tpu.vector_store %arg9[%c0_32, %c0_33], %61 {strides = array<i32>} : memref<128x1xf32, #tpu.memory_space<vmem>>, vector<128x1xf32>,
    } else {
    }
    return
  }
  func.func @transform_0(%arg0: i32, %arg1: i32) -> (i32, i32) {
    %c0_i32 = arith.constant 0 : i32
    return %arg0, %arg1 : i32, i32
  }
  func.func @transform_1(%arg0: i32, %arg1: i32) -> (i32, i32) {
    %c0_i32 = arith.constant 0 : i32
    %c0_i32_0 = arith.constant 0 : i32
    return %arg1, %c0_i32 : i32, i32
  }
  func.func @transform_2(%arg0: i32, %arg1: i32) -> (i32, i32) {
    %c0_i32 = arith.constant 0 : i32
    %c0_i32_0 = arith.constant 0 : i32
    %c0_i32_1 = arith.constant 0 : i32
    return %c0_i32, %c0_i32_0 : i32, i32
  }
  func.func @transform_3(%arg0: i32, %arg1: i32) -> (i32, i32) {
    %c0_i32 = arith.constant 0 : i32
    %c0_i32_0 = arith.constant 0 : i32
    %c0_i32_1 = arith.constant 0 : i32
    return %c0_i32, %c0_i32_0 : i32, i32
  }
  func.func @transform_4(%arg0: i32, %arg1: i32) -> (i32, i32) {
    %c0_i32 = arith.constant 0 : i32
    %c0_i32_0 = arith.constant 0 : i32
    %c0_i32_1 = arith.constant 0 : i32
    return %c0_i32, %c0_i32_0 : i32, i32
  }
  func.func @transform_5(%arg0: i32, %arg1: i32) -> (i32, i32) {
    %c0_i32 = arith.constant 0 : i32
    %c0_i32_0 = arith.constant 0 : i32
    %c0_i32_1 = arith.constant 0 : i32
    return %c0_i32, %c0_i32_0 : i32, i32
  }
  func.func @transform_6(%arg0: i32, %arg1: i32) -> (i32, i32) {
    %c0_i32 = arith.constant 0 : i32
    %c0_i32_0 = arith.constant 0 : i32
    %c0_i32_1 = arith.constant 0 : i32
    return %c0_i32, %c0_i32_0 : i32, i32
  }
  func.func @transform_7(%arg0: i32, %arg1: i32) -> (i32, i32) {
    %c0_i32 = arith.constant 0 : i32
    %c0_i32_0 = arith.constant 0 : i32
    return %arg0, %c0_i32 : i32, i32
  }
}

</mosaic_0001>

<llo_original>
// kernel: explain_model_forward.1
$region0: #{explain_model_forward.1}
  #allocation0 [shape = 'u32[]', space=smem, size = 0x4, offset = 0x4, fixed_abs, tag = 'smem constant byte address 0x4 - core index']
  #allocation1 [shape = 'u32[144,128]{1,0:T(1,128)}', space=vmem, size = 0x12000, scoped, tag = 'internal scratch']
  #allocation2 [shape = 'f32[256,128]{1,0:T(8,128)}', space=vmem, size = 0x20000, scoped, tag = 'scratch operand']
  %s0 = inlined_call_operand.hbm [shape: f32[256,256], index: 0, kind: input, shape index: {}]
  %s1 = inlined_call_operand.hbm [shape: f32[256,128], index: 1, kind: input, shape index: {}]
  %s2 = inlined_call_operand.vmem [shape: f32[2,128], index: 2, kind: input, shape index: {}]
  %s3 = inlined_call_operand.hbm [shape: f32[128,256], index: 3, kind: input, shape index: {}]
  %s4 = inlined_call_operand.hbm [shape: f32[1,256], index: 4, kind: input, shape index: {}]
  %s5 = inlined_call_operand.hbm [shape: f32[256,128], index: 5, kind: input, shape index: {}]
  %s6 = inlined_call_operand.vmem [shape: f32[1,128], index: 6, kind: input, shape index: {}]
  %s7 = inlined_call_operand.vmem [shape: f32[256,1], index: 7, kind: output, shape index: {}]
  %s8 = sld [smem:[#allocation0]]
  $region89: #{explain_model_forward.1} parent=0
    _
  %s10 = ssub.s32 1, %s8
  %s11 = scalar_select 0, %s10, %s8
  $region1: #{explain_model_forward.1} parent=0
    #allocation3 [shape = 'u8[131072]{0}', space=vmem, size = 0x20000, scoped, tag = 'input window, operand 0']
    #allocation4 [shape = 's32[2]{0}', space=sflag, size = 0x8, scoped, tag = 'scoped memory for explain_model_forward.1']
    #allocation5 [shape = 'u8[131072]{0}', space=vmem, size = 0x20000, scoped, tag = 'input window, operand 1']
    #allocation6 [shape = 's32[2]{0}', space=sflag, size = 0x8, scoped, tag = 'scoped memory for explain_model_forward.1']
    #allocation7 [shape = 'u8[131072]{0}', space=vmem, size = 0x20000, scoped, tag = 'input window, operand 3, single buffered']
    #allocation8 [shape = 'u8[1024]{0}', space=vmem, size = 0x400, scoped, tag = 'input window, operand 4, single buffered']
    #allocation9 [shape = 's32[1]{0}', space=sflag, size = 0x4, scoped, tag = 'scoped memory for explain_model_forward.1']
    #allocation10 [shape = 'u8[131072]{0}', space=vmem, size = 0x20000, scoped, tag = 'input window, operand 5, single buffered']
    %12 = vsyncpa [#allocation4], 0
    %s13 = scalar_lea.sflag [#allocation4], 1
    %14 = vsyncpa %s13, 0
    %15 = vsyncpa [#allocation6], 0
    %s16 = scalar_lea.sflag [#allocation6], 1
    %17 = vsyncpa %s16, 0
    %18 = vsyncpa [#allocation9], 0
    loop: start=0, step=1, limit=6
    $region2: #{explain_model_forward.1} parent=1 // loop_pre_header
      _
    $region3: #{explain_model_forward.1} parent=1 // loop_header
      %s20 = sphi 0, %s24
      %p21 = scmp.ge.s32.totalorder %s20, 6
      %s27 = sphi 0, %s39
      %s28 = sphi 0, %s35
      %s29 = sphi 0, %s27
      %s30 = sphi 0, %s28
      %s31 = sphi 0, %s29
      %s32 = sphi 0, %s30
      %s44 = sphi 0, %s46
      %s47 = sphi 0, %s44
      %s48 = sphi 0, %s47
      %s64 = sphi 0, %s48
      %s70 = sphi 0, %s72
      %s73 = sphi 0, %s70
      %s74 = sphi 0, %s73
      %s90 = sphi 0, %s74
      %s94 = sphi 0, %s94
      %s96 = sphi 0, %s94
      %s97 = sphi 0, %s96
      %s111 = sphi 0, %s97
      %s115 = sphi 0, %s115
      %s117 = sphi 0, %s115
      %s118 = sphi 0, %s117
      %s132 = sphi 0, %s118
      %s136 = sphi 0, %s136
      %s138 = sphi 0, %s136
      %s139 = sphi 0, %s138
      %s153 = sphi 0, %s139
      %s157 = sphi 0, %s157
      %s159 = sphi 0, %s157
      %s160 = sphi 0, %s159
      %s174 = sphi 0, %s160
      %s178 = sphi 0, %s178
      %s180 = sphi 0, %s178
      %s181 = sphi 0, %s180
      %s195 = sphi 0, %s181
      %s201 = sphi 0, %s203
      %s204 = sphi 0, %s201
      %s205 = sphi 0, %s204
      %s221 = sphi 0, %s205
    $region4: #{explain_model_forward.1} parent=1 // loop_header_branch
      %23 = sbr.rel (%p21) target = $region8
    $region5: #{explain_model_forward.1} parent=1 // loop_body
      %s25 = ssub.s32 %s20, 1
      %s26 = ssub.s32 %s20, 2
      %s33 = sadd.s32 1, %s28
      %p34 = scmp.ge.s32.totalorder %s33, 2
      %s35 = scalar_select %p34, 0, %s33
      %s36 = sadd.s32 1, %s27
      %s37 = scalar_select %p34, %s36, %s27
      %p38 = scmp.ge.s32.totalorder %s37, 2
      %s39 = scalar_select %p38, 0, %s37
      %s40 = ssub.s32 %s27, %s39
      %s41 = ssub.s32 %s28, %s35
      %s42 = sor.u32 %s40, %s41
      %p43 = scmp.eq.s32.totalorder %s42, 0
      %s45 = sadd.s32 %s44, 1
      %s46 = scalar_select %p43, %s44, %s45
      %p49 = pneg %p43
      %p50 = scmp.eq.s32.totalorder %s20, 3
      %p51 = por %p49, %p50
      %p52 = scmp.ne.s32.totalorder %s44, %s47
      %p53 = scmp.eq.s32.totalorder %s20, 0
      %p54 = por %p52, %p53
      %p55 = scmp.ne.s32.totalorder %s44, %s47
      %p56 = scmp.eq.s32.totalorder %s25, 3
      %p57 = por %p55, %p56
      %p58 = scmp.ne.s32.totalorder %s47, %s48
      %p59 = scmp.eq.s32.totalorder %s25, 0
      %p60 = por %p58, %p59
      %p61 = scmp.ne.s32.totalorder %s47, %s48
      %p62 = scmp.eq.s32.totalorder %s26, 3
      %p63 = por %p61, %p62
      %p65 = scmp.ne.s32.totalorder %s48, %s64
      %p66 = scmp.eq.s32.totalorder %s26, 0
      %p67 = por %p65, %p66
      %s68 = ssub.s32 %s28, %s35
      %p69 = scmp.eq.s32.totalorder %s68, 0
      %s71 = sadd.s32 %s70, 1
      %s72 = scalar_select %p69, %s70, %s71
      %p75 = pneg %p69
      %p76 = scmp.eq.s32.totalorder %s20, 3
      %p77 = por %p75, %p76
      %p78 = scmp.ne.s32.totalorder %s70, %s73
      %p79 = scmp.eq.s32.totalorder %s20, 0
      %p80 = por %p78, %p79
      %p81 = scmp.ne.s32.totalorder %s70, %s73
      %p82 = scmp.eq.s32.totalorder %s25, 3
      %p83 = por %p81, %p82
      %p84 = scmp.ne.s32.totalorder %s73, %s74
      %p85 = scmp.eq.s32.totalorder %s25, 0
      %p86 = por %p84, %p85
      %p87 = scmp.ne.s32.totalorder %s73, %s74
      %p88 = scmp.eq.s32.totalorder %s26, 3
      %p89 = por %p87, %p88
      %p91 = scmp.ne.s32.totalorder %s74, %s90
      %p92 = scmp.eq.s32.totalorder %s26, 0
      %p93 = por %p91, %p92
      %s95 = sadd.s32 %s94, 1
      %p98 = scmp.eq.s32.totalorder %s20, 3
      %p99 = scmp.ne.s32.totalorder %s94, %s96
      %p100 = scmp.eq.s32.totalorder %s20, 0
      %p101 = por %p99, %p100
      %p102 = scmp.ne.s32.totalorder %s94, %s96
      %p103 = scmp.eq.s32.totalorder %s25, 3
      %p104 = por %p102, %p103
      %p105 = scmp.ne.s32.totalorder %s96, %s97
      %p106 = scmp.eq.s32.totalorder %s25, 0
      %p107 = por %p105, %p106
      %p108 = scmp.ne.s32.totalorder %s96, %s97
      %p109 = scmp.eq.s32.totalorder %s26, 3
      %p110 = por %p108, %p109
      %p112 = scmp.ne.s32.totalorder %s97, %s111
      %p113 = scmp.eq.s32.totalorder %s26, 0
      %p114 = por %p112, %p113
      %s116 = sadd.s32 %s115, 1
      %p119 = scmp.eq.s32.totalorder %s20, 3
      %p120 = scmp.ne.s32.totalorder %s115, %s117
      %p121 = scmp.eq.s32.totalorder %s20, 0
      %p122 = por %p120, %p121
      %p123 = scmp.ne.s32.totalorder %s115, %s117
      %p124 = scmp.eq.s32.totalorder %s25, 3
      %p125 = por %p123, %p124
      %p126 = scmp.ne.s32.totalorder %s117, %s118
      %p127 = scmp.eq.s32.totalorder %s25, 0
      %p128 = por %p126, %p127
      %p129 = scmp.ne.s32.totalorder %s117, %s118
      %p130 = scmp.eq.s32.totalorder %s26, 3
      %p131 = por %p129, %p130
      %p133 = scmp.ne.s32.totalorder %s118, %s132
      %p134 = scmp.eq.s32.totalorder %s26, 0
      %p135 = por %p133, %p134
      %s137 = sadd.s32 %s136, 1
      %p140 = scmp.eq.s32.totalorder %s20, 3
      %p141 = scmp.ne.s32.totalorder %s136, %s138
      %p142 = scmp.eq.s32.totalorder %s20, 0
      %p143 = por %p141, %p142
      %p144 = scmp.ne.s32.totalorder %s136, %s138
      %p145 = scmp.eq.s32.totalorder %s25, 3
      %p146 = por %p144, %p145
      %p147 = scmp.ne.s32.totalorder %s138, %s139
      %p148 = scmp.eq.s32.totalorder %s25, 0
      %p149 = por %p147, %p148
      %p150 = scmp.ne.s32.totalorder %s138, %s139
      %p151 = scmp.eq.s32.totalorder %s26, 3
      %p152 = por %p150, %p151
      %p154 = scmp.ne.s32.totalorder %s139, %s153
      %p155 = scmp.eq.s32.totalorder %s26, 0
      %p156 = por %p154, %p155
      %s158 = sadd.s32 %s157, 1
      %p161 = scmp.eq.s32.totalorder %s20, 3
      %p162 = scmp.ne.s32.totalorder %s157, %s159
      %p163 = scmp.eq.s32.totalorder %s20, 0
      %p164 = por %p162, %p163
      %p165 = scmp.ne.s32.totalorder %s157, %s159
      %p166 = scmp.eq.s32.totalorder %s25, 3
      %p167 = por %p165, %p166
      %p168 = scmp.ne.s32.totalorder %s159, %s160
      %p169 = scmp.eq.s32.totalorder %s25, 0
      %p170 = por %p168, %p169
      %p171 = scmp.ne.s32.totalorder %s159, %s160
      %p172 = scmp.eq.s32.totalorder %s26, 3
      %p173 = por %p171, %p172
      %p175 = scmp.ne.s32.totalorder %s160, %s174
      %p176 = scmp.eq.s32.totalorder %s26, 0
      %p177 = por %p175, %p176
      %s179 = sadd.s32 %s178, 1
      %p182 = scmp.eq.s32.totalorder %s20, 3
      %p183 = scmp.ne.s32.totalorder %s178, %s180
      %p184 = scmp.eq.s32.totalorder %s20, 0
      %p185 = por %p183, %p184
      %p186 = scmp.ne.s32.totalorder %s178, %s180
      %p187 = scmp.eq.s32.totalorder %s25, 3
      %p188 = por %p186, %p187
      %p189 = scmp.ne.s32.totalorder %s180, %s181
      %p190 = scmp.eq.s32.totalorder %s25, 0
      %p191 = por %p189, %p190
      %p192 = scmp.ne.s32.totalorder %s180, %s181
      %p193 = scmp.eq.s32.totalorder %s26, 3
      %p194 = por %p192, %p193
      %p196 = scmp.ne.s32.totalorder %s181, %s195
      %p197 = scmp.eq.s32.totalorder %s26, 0
      %p198 = por %p196, %p197
      %s199 = ssub.s32 %s27, %s39
      %p200 = scmp.eq.s32.totalorder %s199, 0
      %s202 = sadd.s32 %s201, 1
      %s203 = scalar_select %p200, %s201, %s202
      %p206 = pneg %p200
      %p207 = scmp.eq.s32.totalorder %s20, 3
      %p208 = por %p206, %p207
      %p209 = scmp.ne.s32.totalorder %s201, %s204
      %p210 = scmp.eq.s32.totalorder %s20, 0
      %p211 = por %p209, %p210
      %p212 = scmp.ne.s32.totalorder %s201, %s204
      %p213 = scmp.eq.s32.totalorder %s25, 3
      %p214 = por %p212, %p213
      %p215 = scmp.ne.s32.totalorder %s204, %s205
      %p216 = scmp.eq.s32.totalorder %s25, 0
      %p217 = por %p215, %p216
      %p218 = scmp.ne.s32.totalorder %s204, %s205
      %p219 = scmp.eq.s32.totalorder %s26, 3
      %p220 = por %p218, %p219
      %p222 = scmp.ne.s32.totalorder %s205, %s221
      %p223 = scmp.eq.s32.totalorder %s26, 0
      %p224 = por %p222, %p223
      %p225 = scmp.le.s32.totalorder 1, %s20
      %p226 = scmp.lt.s32.totalorder %s20, 5
      %p227 = pnand %p225, %p226
      %p228 = pneg %p227
      // Predicated region
      $region9: #{explain_model_forward.1} parent=5 // pred_check
        _
      $region10: #{explain_model_forward.1} parent=5 // pred_check_branch
        %230 = sbr.rel (%p227) target = $region12
      $region11: #{explain_model_forward.1} parent=5 // pred_region
        %s231 = ssub.s32 %s20, 1
        // Predicated region
        $region13: #{explain_model_forward.1} parent=11 // pred_check
          %p232 = pneg %p107
        $region14: #{explain_model_forward.1} parent=11 // pred_check_branch
          %234 = sbr.rel (%p232) target = $region16
        $region15: #{explain_model_forward.1} parent=11 // pred_region
          _
        $region16: #{explain_model_forward.1} parent=11 // pred_fallthru
          _
        // Predicated region
        $region17: #{explain_model_forward.1} parent=11 // pred_check
          %p235 = pneg %p128
        $region18: #{explain_model_forward.1} parent=11 // pred_check_branch
          %237 = sbr.rel (%p235) target = $region20
        $region19: #{explain_model_forward.1} parent=11 // pred_region
          %s239 = ssub.s32 4096, 4096
          %240 = vsyncadd [#allocation6], %s239
          %s241 = sshll.u32 [#allocation7], 4
          %s242 = int_to_ptr.vmem [resolvable:$true] %s241
          %247 = dma.hbm_to_vmem [thread:$0]  %s3, 4096, %s242, [#allocation6], 256, 256, 16
        $region20: #{explain_model_forward.1} parent=11 // pred_fallthru
          _
        // Predicated region
        $region21: #{explain_model_forward.1} parent=11 // pred_check
          %p248 = pneg %p149
        $region22: #{explain_model_forward.1} parent=11 // pred_check_branch
          %250 = sbr.rel (%p248) target = $region24
        $region23: #{explain_model_forward.1} parent=11 // pred_region
          %s252 = ssub.s32 32, 32
          %253 = vsyncadd [#allocation9], %s252
          %s255 = sshll.u32 [#allocation8], 4
          %s256 = int_to_ptr.vmem [resolvable:$true] %s255
          %258 = dma.hbm_to_vmem [thread:$0]  %s4, 32, %s256, [#allocation9]
        $region24: #{explain_model_forward.1} parent=11 // pred_fallthru
          _
        // Predicated region
        $region25: #{explain_model_forward.1} parent=11 // pred_check
          %p259 = pneg %p170
        $region26: #{explain_model_forward.1} parent=11 // pred_check_branch
          %261 = sbr.rel (%p259) target = $region28
        $region27: #{explain_model_forward.1} parent=11 // pred_region
          %s263 = ssub.s32 4096, 4096
          %264 = vsyncadd [#allocation9], %s263
          %s265 = sshll.u32 [#allocation10], 4
          %s266 = int_to_ptr.vmem [resolvable:$true] %s265
          %271 = dma.hbm_to_vmem [thread:$0]  %s5, 4096, %s266, [#allocation9], 128, 128, 8
        $region28: #{explain_model_forward.1} parent=11 // pred_fallthru
          _
        // Predicated region
        $region29: #{explain_model_forward.1} parent=11 // pred_check
          %p272 = pneg %p191
        $region30: #{explain_model_forward.1} parent=11 // pred_check_branch
          %274 = sbr.rel (%p272) target = $region32
        $region31: #{explain_model_forward.1} parent=11 // pred_region
          _
        $region32: #{explain_model_forward.1} parent=11 // pred_fallthru
          _
      $region12: #{explain_model_forward.1} parent=5 // pred_fallthru
        _
      %p275 = scmp.lt.s32.totalorder %s20, 4
      // Predicated region
      $region33: #{explain_model_forward.1} parent=5 // pred_check
        %p276 = pneg %p275
      $region34: #{explain_model_forward.1} parent=5 // pred_check_branch
        %278 = sbr.rel (%p276) target = $region36
      $region35: #{explain_model_forward.1} parent=5 // pred_region
        // Predicated region
        $region37: #{explain_model_forward.1} parent=35 // pred_check
          %p279 = pneg %p54
        $region38: #{explain_model_forward.1} parent=35 // pred_check_branch
          %281 = sbr.rel (%p279) target = $region40
        $region39: #{explain_model_forward.1} parent=35 // pred_region
          %s282 = sand.u32 %s44, 1
          %s283 = scalar_lea.sflag [#allocation4], %s282
          %s284 = sand.u32 %s44, 1
          %s285 = smul.addr %s284, 128
          %s286 = scalar_lea.vmem [#allocation3], %s285
          %s287 = smul.u32 16, %s27
          %s289 = ssub.s32 2048, 2048
          %290 = vsyncadd %s283, %s289
          %s291 = smul.addr %s287, 2
          %s292 = sadd.s32 %s28, %s291
          %s293 = smul.addr %s292, 128
          %s294 = scalar_lea.hbm %s0, %s293
          %s295 = sshll.u32 %s286, 4
          %s296 = int_to_ptr.vmem [resolvable:$true] %s295
          %301 = dma.hbm_to_vmem [thread:$0]  %s294, 2048, %s296, %s283, 256, 128, 8
        $region40: #{explain_model_forward.1} parent=35 // pred_fallthru
          _
        // Predicated region
        $region41: #{explain_model_forward.1} parent=35 // pred_check
          %p302 = pneg %p80
        $region42: #{explain_model_forward.1} parent=35 // pred_check_branch
          %304 = sbr.rel (%p302) target = $region44
        $region43: #{explain_model_forward.1} parent=35 // pred_region
          %s305 = sand.u32 %s20, 1
          %s306 = scalar_lea.sflag [#allocation6], %s305
          %s307 = sand.u32 %s70, 1
          %s308 = smul.addr %s307, 128
          %s309 = scalar_lea.vmem [#allocation5], %s308
          %s310 = smul.u32 16, %s28
          %s312 = ssub.s32 2048, 2048
          %313 = vsyncadd %s306, %s312
          %s314 = smul.addr %s310, 128
          %s315 = scalar_lea.hbm %s1, %s314
          %s316 = sshll.u32 %s309, 4
          %s317 = int_to_ptr.vmem [resolvable:$true] %s316
          %322 = dma.hbm_to_vmem [thread:$0]  %s315, 2048, %s317, %s306, 128, 128, 8
        $region44: #{explain_model_forward.1} parent=35 // pred_fallthru
          _
      $region36: #{explain_model_forward.1} parent=5 // pred_fallthru
        _
      %p323 = scmp.le.s32.totalorder 1, %s20
      %p324 = scmp.lt.s32.totalorder %s20, 5
      %p325 = pnand %p323, %p324
      %p326 = pneg %p325
      // Predicated region
      $region45: #{explain_model_forward.1} parent=5 // pred_check
        _
      $region46: #{explain_model_forward.1} parent=5 // pred_check_branch
        %328 = sbr.rel (%p325) target = $region48
      $region47: #{explain_model_forward.1} parent=5 // pred_region
        %s329 = ssub.s32 %s20, 1
        %s330 = sand.u32 %s47, 1
        %s331 = scalar_lea.sflag [#allocation4], %s330
        %s332 = sand.u32 %s47, 1
        %s333 = smul.addr %s332, 128
        %s334 = scalar_lea.vmem [#allocation3], %s333
        // Predicated region
        $region49: #{explain_model_forward.1} parent=47 // pred_check
          %p335 = pneg %p60
        $region50: #{explain_model_forward.1} parent=47 // pred_check_branch
          %337 = sbr.rel (%p335) target = $region52
        $region51: #{explain_model_forward.1} parent=47 // pred_region
          %338 = dma.done %s331, 2048
        $region52: #{explain_model_forward.1} parent=47 // pred_fallthru
          _
        %s339 = sand.u32 %s25, 1
        %s340 = scalar_lea.sflag [#allocation6], %s339
        %s341 = sand.u32 %s73, 1
        %s342 = smul.addr %s341, 128
        %s343 = scalar_lea.vmem [#allocation5], %s342
        // Predicated region
        $region53: #{explain_model_forward.1} parent=47 // pred_check
          %p344 = pneg %p86
        $region54: #{explain_model_forward.1} parent=47 // pred_check_branch
          %346 = sbr.rel (%p344) target = $region56
        $region55: #{explain_model_forward.1} parent=47 // pred_region
          %347 = dma.done %s340, 2048
        $region56: #{explain_model_forward.1} parent=47 // pred_fallthru
          _
        // Predicated region
        $region57: #{explain_model_forward.1} parent=47 // pred_check
          %p348 = pneg %p128
        $region58: #{explain_model_forward.1} parent=47 // pred_check_branch
          %350 = sbr.rel (%p348) target = $region60
        $region59: #{explain_model_forward.1} parent=47 // pred_region
          %351 = dma.done [#allocation6], 4096
        $region60: #{explain_model_forward.1} parent=47 // pred_fallthru
          _
        // Predicated region
        $region61: #{explain_model_forward.1} parent=47 // pred_check
          %p352 = pneg %p149
        $region62: #{explain_model_forward.1} parent=47 // pred_check_branch
          %354 = sbr.rel (%p352) target = $region64
        $region63: #{explain_model_forward.1} parent=47 // pred_region
          %355 = dma.done [#allocation9], 32
        $region64: #{explain_model_forward.1} parent=47 // pred_fallthru
          _
        // Predicated region
        $region65: #{explain_model_forward.1} parent=47 // pred_check
          %p356 = pneg %p170
        $region66: #{explain_model_forward.1} parent=47 // pred_check_branch
          %358 = sbr.rel (%p356) target = $region68
        $region67: #{explain_model_forward.1} parent=47 // pred_region
          %359 = dma.done [#allocation9], 4096
        $region68: #{explain_model_forward.1} parent=47 // pred_fallthru
          _
        %s360 = sand.u32 %s47, 1
        %s361 = scalar_lea.sflag [#allocation4], %s360
        %s362 = sand.u32 %s47, 1
        %s363 = smul.addr %s362, 128
        %s364 = scalar_lea.vmem [#allocation3], %s363
        %p365 = pneg %p60
        %p366 = pneg %p57
        %s367 = sand.u32 %s25, 1
        %s368 = scalar_lea.sflag [#allocation6], %s367
        %s369 = sand.u32 %s73, 1
        %s370 = smul.addr %s369, 128
        %s371 = scalar_lea.vmem [#allocation5], %s370
        %p372 = pneg %p86
        %p373 = pneg %p83
        %p374 = pneg %p107
        %p375 = pneg %p104
        %p376 = pneg %p128
        %p377 = pneg %p125
        %p378 = pneg %p149
        %p379 = pneg %p146
        %p380 = pneg %p170
        %p381 = pneg %p167
        %p382 = pneg %p191
        %p383 = pneg %p188
        %p384 = pneg %p217
        %p385 = pneg %p214
        %s386 = smul.u32 16, %s29
        %p387 = scmp.lt.s32.totalorder %s386, 31
        %s388 = scalar_select %p387, %s386, 31
        %s389 = smul.addr %s388, 8
        %s390 = scalar_lea.vmem %s7, %s389
        %s391 = smul.u32 16, %s29
        %s392 = smul.u32 16, %s30
        %s393 = smul.u32 16, %s29
        %p394 = scmp.lt.s32.totalorder %s393, 31
        %s395 = scalar_select %p394, %s393, 31
        %s396 = smul.addr %s395, 8
        %s397 = scalar_lea.vmem %s7, %s396
        %s398 = smul.u32 16, %s29
        %p399 = scmp.eq.s32.totalorder %s30, 0
        // Predicated region
        $region69: #{explain_model_forward.1} parent=47 // pred_check
          %p400 = pneg %p399
        $region70: #{explain_model_forward.1} parent=47 // pred_check_branch
          %402 = sbr.rel (%p400) target = $region72
        $region71: #{explain_model_forward.1} parent=47 // pred_region
          %v403 = vld [vmem:[%s2] sm:$0x1]
          %v404 = vlaneseq
          %v405 = vshrl.u32 %v404, 7
          %v406 = vsub.s32 0, %v405
          %v407 = vrot.slane %v403, %v406
          %408 = vst [vmem:[#allocation2] sm:$0xff] %v407
          %409 = vst [vmem:[#allocation2 + $0x8] sm:$0xff] %v407
          %410 = vst [vmem:[#allocation2 + $0x10] sm:$0xff] %v407
          %411 = vst [vmem:[#allocation2 + $0x18] sm:$0xff] %v407
          %412 = vst [vmem:[#allocation2 + $0x20] sm:$0xff] %v407
          %413 = vst [vmem:[#allocation2 + $0x28] sm:$0xff] %v407
          %414 = vst [vmem:[#allocation2 + $0x30] sm:$0xff] %v407
          %415 = vst [vmem:[#allocation2 + $0x38] sm:$0xff] %v407
          %416 = vst [vmem:[#allocation2 + $0x40] sm:$0xff] %v407
          %417 = vst [vmem:[#allocation2 + $0x48] sm:$0xff] %v407
          %418 = vst [vmem:[#allocation2 + $0x50] sm:$0xff] %v407
          %419 = vst [vmem:[#allocation2 + $0x58] sm:$0xff] %v407
          %420 = vst [vmem:[#allocation2 + $0x60] sm:$0xff] %v407
          %421 = vst [vmem:[#allocation2 + $0x68] sm:$0xff] %v407
          %422 = vst [vmem:[#allocation2 + $0x70] sm:$0xff] %v407
          %423 = vst [vmem:[#allocation2 + $0x78] sm:$0xff] %v407
          %v424 = vld [vmem:[%s2 + $0x1] sm:$0x1]
          %v425 = vlaneseq
          %v426 = vshrl.u32 %v425, 7
          %v427 = vsub.s32 0, %v426
          %v428 = vrot.slane %v424, %v427
          %429 = vst [vmem:[#allocation2 + $0x80] sm:$0xff] %v428
          %430 = vst [vmem:[#allocation2 + $0x88] sm:$0xff] %v428
          %431 = vst [vmem:[#allocation2 + $0x90] sm:$0xff] %v428
          %432 = vst [vmem:[#allocation2 + $0x98] sm:$0xff] %v428
          %433 = vst [vmem:[#allocation2 + $0xa0] sm:$0xff] %v428
          %434 = vst [vmem:[#allocation2 + $0xa8] sm:$0xff] %v428
          %435 = vst [vmem:[#allocation2 + $0xb0] sm:$0xff] %v428
          %436 = vst [vmem:[#allocation2 + $0xb8] sm:$0xff] %v428
          %437 = vst [vmem:[#allocation2 + $0xc0] sm:$0xff] %v428
          %438 = vst [vmem:[#allocation2 + $0xc8] sm:$0xff] %v428
          %439 = vst [vmem:[#allocation2 + $0xd0] sm:$0xff] %v428
          %440 = vst [vmem:[#allocation2 + $0xd8] sm:$0xff] %v428
          %441 = vst [vmem:[#allocation2 + $0xe0] sm:$0xff] %v428
          %442 = vst [vmem:[#allocation2 + $0xe8] sm:$0xff] %v428
          %443 = vst [vmem:[#allocation2 + $0xf0] sm:$0xff] %v428
          %444 = vst [vmem:[#allocation2 + $0xf8] sm:$0xff] %v428
        $region72: #{explain_model_forward.1} parent=47 // pred_fallthru
          _
        %v445 = vld [vmem:[%s334] sm:$0xff]
        %v446 = vld [vmem:[%s334 + $0x8] sm:$0xff]
        %v447 = vld [vmem:[%s334 + $0x10] sm:$0xff]
        %v448 = vld [vmem:[%s334 + $0x18] sm:$0xff]
        %v449 = vld [vmem:[%s334 + $0x20] sm:$0xff]
        %v450 = vld [vmem:[%s334 + $0x28] sm:$0xff]
        %v451 = vld [vmem:[%s334 + $0x30] sm:$0xff]
        %v452 = vld [vmem:[%s334 + $0x38] sm:$0xff]
        %v453 = vld [vmem:[%s334 + $0x40] sm:$0xff]
        %v454 = vld [vmem:[%s334 + $0x48] sm:$0xff]
        %v455 = vld [vmem:[%s334 + $0x50] sm:$0xff]
        %v456 = vld [vmem:[%s334 + $0x58] sm:$0xff]
        %v457 = vld [vmem:[%s334 + $0x60] sm:$0xff]
        %v458 = vld [vmem:[%s334 + $0x68] sm:$0xff]
        %v459 = vld [vmem:[%s334 + $0x70] sm:$0xff]
        %v460 = vld [vmem:[%s334 + $0x78] sm:$0xff]
        %s461 = smul.u32 %s30, 128
        %v462 = vlaneseq
        %v463 = vand.u32 %v462, 127
        %v464 = vstv %s461
        %v465 = vadd.s32 %v464, %v463
        %vm466 = vcmp.lt.s32.totalorder %v465, 120
        %v467 = vsel %vm466, %v445, 0.0
        %v468 = vsel %vm466, %v446, 0.0
        %v469 = vsel %vm466, %v447, 0.0
        %v470 = vsel %vm466, %v448, 0.0
        %v471 = vsel %vm466, %v449, 0.0
        %v472 = vsel %vm466, %v450, 0.0
        %v473 = vsel %vm466, %v451, 0.0
        %v474 = vsel %vm466, %v452, 0.0
        %v475 = vsel %vm466, %v453, 0.0
        %v476 = vsel %vm466, %v454, 0.0
        %v477 = vsel %vm466, %v455, 0.0
        %v478 = vsel %vm466, %v456, 0.0
        %v479 = vsel %vm466, %v457, 0.0
        %v480 = vsel %vm466, %v458, 0.0
        %v481 = vsel %vm466, %v459, 0.0
        %v482 = vsel %vm466, %v460, 0.0
        %vm483 = vcmp.ge.s32.totalorder %v465, 120
        %vm484 = vcmp.lt.s32.totalorder %v465, 248
        %vm485 = vmand %vm483, %vm484
        %v486 = vsel %vm485, %v445, 0.0
        %v487 = vsel %vm485, %v446, 0.0
        %v488 = vsel %vm485, %v447, 0.0
        %v489 = vsel %vm485, %v448, 0.0
        %v490 = vsel %vm485, %v449, 0.0
        %v491 = vsel %vm485, %v450, 0.0
        %v492 = vsel %vm485, %v451, 0.0
        %v493 = vsel %vm485, %v452, 0.0
        %v494 = vsel %vm485, %v453, 0.0
        %v495 = vsel %vm485, %v454, 0.0
        %v496 = vsel %vm485, %v455, 0.0
        %v497 = vsel %vm485, %v456, 0.0
        %v498 = vsel %vm485, %v457, 0.0
        %v499 = vsel %vm485, %v458, 0.0
        %v500 = vsel %vm485, %v459, 0.0
        %v501 = vsel %vm485, %v460, 0.0
        %v502 = vld [vmem:[%s343] sm:$0xff]
        %v503 = vld [vmem:[%s343 + $0x8] sm:$0xff]
        %v504 = vld [vmem:[%s343 + $0x10] sm:$0xff]
        %v505 = vld [vmem:[%s343 + $0x18] sm:$0xff]
        %v506 = vld [vmem:[%s343 + $0x20] sm:$0xff]
        %v507 = vld [vmem:[%s343 + $0x28] sm:$0xff]
        %v508 = vld [vmem:[%s343 + $0x30] sm:$0xff]
        %v509 = vld [vmem:[%s343 + $0x38] sm:$0xff]
        %v510 = vld [vmem:[%s343 + $0x40] sm:$0xff]
        %v511 = vld [vmem:[%s343 + $0x48] sm:$0xff]
        %v512 = vld [vmem:[%s343 + $0x50] sm:$0xff]
        %v513 = vld [vmem:[%s343 + $0x58] sm:$0xff]
        %v514 = vld [vmem:[%s343 + $0x60] sm:$0xff]
        %v515 = vld [vmem:[%s343 + $0x68] sm:$0xff]
        %v516 = vld [vmem:[%s343 + $0x70] sm:$0xff]
        %v517 = vld [vmem:[%s343 + $0x78] sm:$0xff]
        %v518 = vld [vmem:[#allocation2] sm:$0xff]
        %v519 = vld [vmem:[#allocation2 + $0x8] sm:$0xff]
        %v520 = vld [vmem:[#allocation2 + $0x10] sm:$0xff]
        %v521 = vld [vmem:[#allocation2 + $0x18] sm:$0xff]
        %v522 = vld [vmem:[#allocation2 + $0x20] sm:$0xff]
        %v523 = vld [vmem:[#allocation2 + $0x28] sm:$0xff]
        %v524 = vld [vmem:[#allocation2 + $0x30] sm:$0xff]
        %v525 = vld [vmem:[#allocation2 + $0x38] sm:$0xff]
        %v526 = vld [vmem:[#allocation2 + $0x40] sm:$0xff]
        %v527 = vld [vmem:[#allocation2 + $0x48] sm:$0xff]
        %v528 = vld [vmem:[#allocation2 + $0x50] sm:$0xff]
        %v529 = vld [vmem:[#allocation2 + $0x58] sm:$0xff]
        %v530 = vld [vmem:[#allocation2 + $0x60] sm:$0xff]
        %v531 = vld [vmem:[#allocation2 + $0x68] sm:$0xff]
        %v532 = vld [vmem:[#allocation2 + $0x70] sm:$0xff]
        %v533 = vld [vmem:[#allocation2 + $0x78] sm:$0xff]
        %534 = vmatprep.subr.mxu0 0.0
        %535 = vmatpush1.msra.mxu0 %v502
        %536 = vmatprep.subr.mxu0 0.0
        %537 = vmatpush1.msra.mxu0 %v503
        %538 = vmatprep.subr.mxu0 0.0
        %539 = vmatpush1.msra.mxu0 %v504
        %540 = vmatprep.subr.mxu0 0.0
        %541 = vmatpush1.msra.mxu0 %v505
        %542 = vmatprep.subr.mxu0 0.0
        %543 = vmatpush1.msra.mxu0 %v506
        %544 = vmatprep.subr.mxu0 0.0
        %545 = vmatpush1.msra.mxu0 %v507
        %546 = vmatprep.subr.mxu0 0.0
        %547 = vmatpush1.msra.mxu0 %v508
        %548 = vmatprep.subr.mxu0 0.0
        %549 = vmatpush1.msra.mxu0 %v509
        %550 = vmatprep.subr.mxu0 0.0
        %551 = vmatpush1.msra.mxu0 %v510
        %552 = vmatprep.subr.mxu0 0.0
        %553 = vmatpush1.msra.mxu0 %v511
        %554 = vmatprep.subr.mxu0 0.0
        %555 = vmatpush1.msra.mxu0 %v512
        %556 = vmatprep.subr.mxu0 0.0
        %557 = vmatpush1.msra.mxu0 %v513
        %558 = vmatprep.subr.mxu0 0.0
        %559 = vmatpush1.msra.mxu0 %v514
        %560 = vmatprep.subr.mxu0 0.0
        %561 = vmatpush1.msra.mxu0 %v515
        %562 = vmatprep.subr.mxu0 0.0
        %563 = vmatpush1.msra.mxu0 %v516
        %564 = vmatprep.subr.mxu0 0.0
        %565 = vmatpush1.msra.mxu0 %v517
        %566 = vmatprep.subr.mxu0 0.0
        %567 = vmatpush1.msra.mxu0 0.0
        %568 = vmatprep.subr.mxu0 0.0
        %569 = vmatpush1.msra.mxu0 0.0
        %570 = vmatprep.subr.mxu0 0.0
        %571 = vmatpush1.msra.mxu0 0.0
        %572 = vmatprep.subr.mxu0 0.0
        %573 = vmatpush1.msra.mxu0 0.0
        %574 = vmatprep.subr.mxu0 0.0
        %575 = vmatpush1.msra.mxu0 0.0
        %576 = vmatprep.subr.mxu0 0.0
        %577 = vmatpush1.msra.mxu0 0.0
        %578 = vmatprep.subr.mxu0 0.0
        %579 = vmatpush1.msra.mxu0 0.0
        %580 = vmatprep.subr.mxu0 0.0
        %581 = vmatpush1.msra.mxu0 0.0
        %582 = vmatprep.subr.mxu0 0.0
        %583 = vmatpush1.msra.mxu0 0.0
        %584 = vmatprep.subr.mxu0 0.0
        %585 = vmatpush1.msra.mxu0 0.0
        %586 = vmatprep.subr.mxu0 0.0
        %587 = vmatpush1.msra.mxu0 0.0
        %588 = vmatprep.subr.mxu0 0.0
        %589 = vmatpush1.msra.mxu0 0.0
        %590 = vmatprep.subr.mxu0 0.0
        %591 = vmatpush1.msra.mxu0 0.0
        %592 = vmatprep.subr.mxu0 0.0
        %593 = vmatpush1.msra.mxu0 0.0
        %594 = vmatprep.subr.mxu0 0.0
        %595 = vmatpush1.msra.mxu0 0.0
        %596 = vmatprep.subr.mxu0 0.0
        %597 = vmatpush1.msra.mxu0 0.0
        %598 = vmatprep.mubr.f32.mxu0 0.0
        %599 = vmatmul.mubr.f32.gmra.mrb[0].mxu0 %v467
        %v600 = vpop.f32.mrb[0].mxu0
        %v601 = vadd.f32 0.0, %v600
        %v602 = vpop.f32.mrb[0].mxu0
        %603 = vmatprep.mubr.f32.mxu0 0.0
        %604 = vmatmul.mubr.f32.gmra.mrb[0].mxu0 %v468
        %v605 = vpop.f32.mrb[0].mxu0
        %v606 = vadd.f32 0.0, %v605
        %v607 = vpop.f32.mrb[0].mxu0
        %608 = vmatprep.mubr.f32.mxu0 0.0
        %609 = vmatmul.mubr.f32.gmra.mrb[0].mxu0 %v469
        %v610 = vpop.f32.mrb[0].mxu0
        %v611 = vadd.f32 0.0, %v610
        %v612 = vpop.f32.mrb[0].mxu0
        %613 = vmatprep.mubr.f32.mxu0 0.0
        %614 = vmatmul.mubr.f32.gmra.mrb[0].mxu0 %v470
        %v615 = vpop.f32.mrb[0].mxu0
        %v616 = vadd.f32 0.0, %v615
        %v617 = vpop.f32.mrb[0].mxu0
        %618 = vmatprep.mubr.f32.mxu0 0.0
        %619 = vmatmul.mubr.f32.gmra.mrb[0].mxu0 %v471
        %v620 = vpop.f32.mrb[0].mxu0
        %v621 = vadd.f32 0.0, %v620
        %v622 = vpop.f32.mrb[0].mxu0
        %623 = vmatprep.mubr.f32.mxu0 0.0
        %624 = vmatmul.mubr.f32.gmra.mrb[0].mxu0 %v472
        %v625 = vpop.f32.mrb[0].mxu0
        %v626 = vadd.f32 0.0, %v625
        %v627 = vpop.f32.mrb[0].mxu0
        %628 = vmatprep.mubr.f32.mxu0 0.0
        %629 = vmatmul.mubr.f32.gmra.mrb[0].mxu0 %v473
        %v630 = vpop.f32.mrb[0].mxu0
        %v631 = vadd.f32 0.0, %v630
        %v632 = vpop.f32.mrb[0].mxu0
        %633 = vmatprep.mubr.f32.mxu0 0.0
        %634 = vmatmul.mubr.f32.gmra.mrb[0].mxu0 %v474
        %v635 = vpop.f32.mrb[0].mxu0
        %v636 = vadd.f32 0.0, %v635
        %v637 = vpop.f32.mrb[0].mxu0
        %638 = vmatprep.mubr.f32.mxu0 0.0
        %639 = vmatmul.mubr.f32.gmra.mrb[0].mxu0 %v475
        %v640 = vpop.f32.mrb[0].mxu0
        %v641 = vadd.f32 0.0, %v640
        %v642 = vpop.f32.mrb[0].mxu0
        %643 = vmatprep.mubr.f32.mxu0 0.0
        %644 = vmatmul.mubr.f32.gmra.mrb[0].mxu0 %v476
        %v645 = vpop.f32.mrb[0].mxu0
        %v646 = vadd.f32 0.0, %v645
        %v647 = vpop.f32.mrb[0].mxu0
        %648 = vmatprep.mubr.f32.mxu0 0.0
        %649 = vmatmul.mubr.f32.gmra.mrb[0].mxu0 %v477
        %v650 = vpop.f32.mrb[0].mxu0
        %v651 = vadd.f32 0.0, %v650
        %v652 = vpop.f32.mrb[0].mxu0
        %653 = vmatprep.mubr.f32.mxu0 0.0
        %654 = vmatmul.mubr.f32.gmra.mrb[0].mxu0 %v478
        %v655 = vpop.f32.mrb[0].mxu0
        %v656 = vadd.f32 0.0, %v655
        %v657 = vpop.f32.mrb[0].mxu0
        %658 = vmatprep.mubr.f32.mxu0 0.0
        %659 = vmatmul.mubr.f32.gmra.mrb[0].mxu0 %v479
        %v660 = vpop.f32.mrb[0].mxu0
        %v661 = vadd.f32 0.0, %v660
        %v662 = vpop.f32.mrb[0].mxu0
        %663 = vmatprep.mubr.f32.mxu0 0.0
        %664 = vmatmul.mubr.f32.gmra.mrb[0].mxu0 %v480
        %v665 = vpop.f32.mrb[0].mxu0
        %v666 = vadd.f32 0.0, %v665
        %v667 = vpop.f32.mrb[0].mxu0
        %668 = vmatprep.mubr.f32.mxu0 0.0
        %669 = vmatmul.mubr.f32.gmra.mrb[0].mxu0 %v481
        %v670 = vpop.f32.mrb[0].mxu0
        %v671 = vadd.f32 0.0, %v670
        %v672 = vpop.f32.mrb[0].mxu0
        %673 = vmatprep.mubr.f32.mxu0 0.0
        %674 = vmatmul.mubr.f32.gmra.mrb[0].mxu0 %v482
        %v675 = vpop.f32.mrb[0].mxu0
        %v676 = vadd.f32 0.0, %v675
        %v677 = vpop.f32.mrb[0].mxu0
        %678 = vdwg.mxu0
        %v679 = vadd.f32 %v518, %v601
        %v680 = vadd.f32 %v519, %v606
        %v681 = vadd.f32 %v520, %v611
        %v682 = vadd.f32 %v521, %v616
        %v683 = vadd.f32 %v522, %v621
        %v684 = vadd.f32 %v523, %v626
        %v685 = vadd.f32 %v524, %v631
        %v686 = vadd.f32 %v525, %v636
        %v687 = vadd.f32 %v526, %v641
        %v688 = vadd.f32 %v527, %v646
        %v689 = vadd.f32 %v528, %v651
        %v690 = vadd.f32 %v529, %v656
        %v691 = vadd.f32 %v530, %v661
        %v692 = vadd.f32 %v531, %v666
        %v693 = vadd.f32 %v532, %v671
        %v694 = vadd.f32 %v533, %v676
        %695 = vst [vmem:[#allocation2] sm:$0xff] %v679
        %696 = vst [vmem:[#allocation2 + $0x8] sm:$0xff] %v680
        %697 = vst [vmem:[#allocation2 + $0x10] sm:$0xff] %v681
        %698 = vst [vmem:[#allocation2 + $0x18] sm:$0xff] %v682
        %699 = vst [vmem:[#allocation2 + $0x20] sm:$0xff] %v683
        %700 = vst [vmem:[#allocation2 + $0x28] sm:$0xff] %v684
        %701 = vst [vmem:[#allocation2 + $0x30] sm:$0xff] %v685
        %702 = vst [vmem:[#allocation2 + $0x38] sm:$0xff] %v686
        %703 = vst [vmem:[#allocation2 + $0x40] sm:$0xff] %v687
        %704 = vst [vmem:[#allocation2 + $0x48] sm:$0xff] %v688
        %705 = vst [vmem:[#allocation2 + $0x50] sm:$0xff] %v689
        %706 = vst [vmem:[#allocation2 + $0x58] sm:$0xff] %v690
        %707 = vst [vmem:[#allocation2 + $0x60] sm:$0xff] %v691
        %708 = vst [vmem:[#allocation2 + $0x68] sm:$0xff] %v692
        %709 = vst [vmem:[#allocation2 + $0x70] sm:$0xff] %v693
        %710 = vst [vmem:[#allocation2 + $0x78] sm:$0xff] %v694
        %v711 = vld [vmem:[#allocation2 + $0x80] sm:$0xff]
        %v712 = vld [vmem:[#allocation2 + $0x88] sm:$0xff]
        %v713 = vld [vmem:[#allocation2 + $0x90] sm:$0xff]
        %v714 = vld [vmem:[#allocation2 + $0x98] sm:$0xff]
        %v715 = vld [vmem:[#allocation2 + $0xa0] sm:$0xff]
        %v716 = vld [vmem:[#allocation2 + $0xa8] sm:$0xff]
        %v717 = vld [vmem:[#allocation2 + $0xb0] sm:$0xff]
        %v718 = vld [vmem:[#allocation2 + $0xb8] sm:$0xff]
        %v719 = vld [vmem:[#allocation2 + $0xc0] sm:$0xff]
        %v720 = vld [vmem:[#allocation2 + $0xc8] sm:$0xff]
        %v721 = vld [vmem:[#allocation2 + $0xd0] sm:$0xff]
        %v722 = vld [vmem:[#allocation2 + $0xd8] sm:$0xff]
        %v723 = vld [vmem:[#allocation2 + $0xe0] sm:$0xff]
        %v724 = vld [vmem:[#allocation2 + $0xe8] sm:$0xff]
        %v725 = vld [vmem:[#allocation2 + $0xf0] sm:$0xff]
        %v726 = vld [vmem:[#allocation2 + $0xf8] sm:$0xff]
        %727 = vmatprep.subr.mxu0 0.0
        %728 = vmatpush1.msra.mxu0 %v502
        %729 = vmatprep.subr.mxu0 0.0
        %730 = vmatpush1.msra.mxu0 %v503
        %731 = vmatprep.subr.mxu0 0.0
        %732 = vmatpush1.msra.mxu0 %v504
        %733 = vmatprep.subr.mxu0 0.0
        %734 = vmatpush1.msra.mxu0 %v505
        %735 = vmatprep.subr.mxu0 0.0
        %736 = vmatpush1.msra.mxu0 %v506
        %737 = vmatprep.subr.mxu0 0.0
        %738 = vmatpush1.msra.mxu0 %v507
        %739 = vmatprep.subr.mxu0 0.0
        %740 = vmatpush1.msra.mxu0 %v508
        %741 = vmatprep.subr.mxu0 0.0
        %742 = vmatpush1.msra.mxu0 %v509
        %743 = vmatprep.subr.mxu0 0.0
        %744 = vmatpush1.msra.mxu0 %v510
        %745 = vmatprep.subr.mxu0 0.0
        %746 = vmatpush1.msra.mxu0 %v511
        %747 = vmatprep.subr.mxu0 0.0
        %748 = vmatpush1.msra.mxu0 %v512
        %749 = vmatprep.subr.mxu0 0.0
        %750 = vmatpush1.msra.mxu0 %v513
        %751 = vmatprep.subr.mxu0 0.0
        %752 = vmatpush1.msra.mxu0 %v514
        %753 = vmatprep.subr.mxu0 0.0
        %754 = vmatpush1.msra.mxu0 %v515
        %755 = vmatprep.subr.mxu0 0.0
        %756 = vmatpush1.msra.mxu0 %v516
        %757 = vmatprep.subr.mxu0 0.0
        %758 = vmatpush1.msra.mxu0 %v517
        %759 = vmatprep.subr.mxu0 0.0
        %760 = vmatpush1.msra.mxu0 0.0
        %761 = vmatprep.subr.mxu0 0.0
        %762 = vmatpush1.msra.mxu0 0.0
        %763 = vmatprep.subr.mxu0 0.0
        %764 = vmatpush1.msra.mxu0 0.0
        %765 = vmatprep.subr.mxu0 0.0
        %766 = vmatpush1.msra.mxu0 0.0
        %767 = vmatprep.subr.mxu0 0.0
        %768 = vmatpush1.msra.mxu0 0.0
        %769 = vmatprep.subr.mxu0 0.0
        %770 = vmatpush1.msra.mxu0 0.0
        %771 = vmatprep.subr.mxu0 0.0
        %772 = vmatpush1.msra.mxu0 0.0
        %773 = vmatprep.subr.mxu0 0.0
        %774 = vmatpush1.msra.mxu0 0.0
        %775 = vmatprep.subr.mxu0 0.0
        %776 = vmatpush1.msra.mxu0 0.0
        %777 = vmatprep.subr.mxu0 0.0
        %778 = vmatpush1.msra.mxu0 0.0
        %779 = vmatprep.subr.mxu0 0.0
        %780 = vmatpush1.msra.mxu0 0.0
        %781 = vmatprep.subr.mxu0 0.0
        %782 = vmatpush1.msra.mxu0 0.0
        %783 = vmatprep.subr.mxu0 0.0
        %784 = vmatpush1.msra.mxu0 0.0
        %785 = vmatprep.subr.mxu0 0.0
        %786 = vmatpush1.msra.mxu0 0.0
        %787 = vmatprep.subr.mxu0 0.0
        %788 = vmatpush1.msra.mxu0 0.0
        %789 = vmatprep.subr.mxu0 0.0
        %790 = vmatpush1.msra.mxu0 0.0
        %791 = vmatprep.mubr.f32.mxu0 0.0
        %792 = vmatmul.mubr.f32.gmra.mrb[0].mxu0 %v486
        %v793 = vpop.f32.mrb[0].mxu0
        %v794 = vadd.f32 0.0, %v793
        %v795 = vpop.f32.mrb[0].mxu0
        %796 = vmatprep.mubr.f32.mxu0 0.0
        %797 = vmatmul.mubr.f32.gmra.mrb[0].mxu0 %v487
        %v798 = vpop.f32.mrb[0].mxu0
        %v799 = vadd.f32 0.0, %v798
        %v800 = vpop.f32.mrb[0].mxu0
        %801 = vmatprep.mubr.f32.mxu0 0.0
        %802 = vmatmul.mubr.f32.gmra.mrb[0].mxu0 %v488
        %v803 = vpop.f32.mrb[0].mxu0
        %v804 = vadd.f32 0.0, %v803
        %v805 = vpop.f32.mrb[0].mxu0
        %806 = vmatprep.mubr.f32.mxu0 0.0
        %807 = vmatmul.mubr.f32.gmra.mrb[0].mxu0 %v489
        %v808 = vpop.f32.mrb[0].mxu0
        %v809 = vadd.f32 0.0, %v808
        %v810 = vpop.f32.mrb[0].mxu0
        %811 = vmatprep.mubr.f32.mxu0 0.0
        %812 = vmatmul.mubr.f32.gmra.mrb[0].mxu0 %v490
        %v813 = vpop.f32.mrb[0].mxu0
        %v814 = vadd.f32 0.0, %v813
        %v815 = vpop.f32.mrb[0].mxu0
        %816 = vmatprep.mubr.f32.mxu0 0.0
        %817 = vmatmul.mubr.f32.gmra.mrb[0].mxu0 %v491
        %v818 = vpop.f32.mrb[0].mxu0
        %v819 = vadd.f32 0.0, %v818
        %v820 = vpop.f32.mrb[0].mxu0
        %821 = vmatprep.mubr.f32.mxu0 0.0
        %822 = vmatmul.mubr.f32.gmra.mrb[0].mxu0 %v492
        %v823 = vpop.f32.mrb[0].mxu0
        %v824 = vadd.f32 0.0, %v823
        %v825 = vpop.f32.mrb[0].mxu0
        %826 = vmatprep.mubr.f32.mxu0 0.0
        %827 = vmatmul.mubr.f32.gmra.mrb[0].mxu0 %v493
        %v828 = vpop.f32.mrb[0].mxu0
        %v829 = vadd.f32 0.0, %v828
        %v830 = vpop.f32.mrb[0].mxu0
        %831 = vmatprep.mubr.f32.mxu0 0.0
        %832 = vmatmul.mubr.f32.gmra.mrb[0].mxu0 %v494
        %v833 = vpop.f32.mrb[0].mxu0
        %v834 = vadd.f32 0.0, %v833
        %v835 = vpop.f32.mrb[0].mxu0
        %836 = vmatprep.mubr.f32.mxu0 0.0
        %837 = vmatmul.mubr.f32.gmra.mrb[0].mxu0 %v495
        %v838 = vpop.f32.mrb[0].mxu0
        %v839 = vadd.f32 0.0, %v838
        %v840 = vpop.f32.mrb[0].mxu0
        %841 = vmatprep.mubr.f32.mxu0 0.0
        %842 = vmatmul.mubr.f32.gmra.mrb[0].mxu0 %v496
        %v843 = vpop.f32.mrb[0].mxu0
        %v844 = vadd.f32 0.0, %v843
        %v845 = vpop.f32.mrb[0].mxu0
        %846 = vmatprep.mubr.f32.mxu0 0.0
        %847 = vmatmul.mubr.f32.gmra.mrb[0].mxu0 %v497
        %v848 = vpop.f32.mrb[0].mxu0
        %v849 = vadd.f32 0.0, %v848
        %v850 = vpop.f32.mrb[0].mxu0
        %851 = vmatprep.mubr.f32.mxu0 0.0
        %852 = vmatmul.mubr.f32.gmra.mrb[0].mxu0 %v498
        %v853 = vpop.f32.mrb[0].mxu0
        %v854 = vadd.f32 0.0, %v853
        %v855 = vpop.f32.mrb[0].mxu0
        %856 = vmatprep.mubr.f32.mxu0 0.0
        %857 = vmatmul.mubr.f32.gmra.mrb[0].mxu0 %v499
        %v858 = vpop.f32.mrb[0].mxu0
        %v859 = vadd.f32 0.0, %v858
        %v860 = vpop.f32.mrb[0].mxu0
        %861 = vmatprep.mubr.f32.mxu0 0.0
        %862 = vmatmul.mubr.f32.gmra.mrb[0].mxu0 %v500
        %v863 = vpop.f32.mrb[0].mxu0
        %v864 = vadd.f32 0.0, %v863
        %v865 = vpop.f32.mrb[0].mxu0
        %866 = vmatprep.mubr.f32.mxu0 0.0
        %867 = vmatmul.mubr.f32.gmra.mrb[0].mxu0 %v501
        %v868 = vpop.f32.mrb[0].mxu0
        %v869 = vadd.f32 0.0, %v868
        %v870 = vpop.f32.mrb[0].mxu0
        %871 = vdwg.mxu0
        %v872 = vadd.f32 %v711, %v794
        %v873 = vadd.f32 %v712, %v799
        %v874 = vadd.f32 %v713, %v804
        %v875 = vadd.f32 %v714, %v809
        %v876 = vadd.f32 %v715, %v814
        %v877 = vadd.f32 %v716, %v819
        %v878 = vadd.f32 %v717, %v824
        %v879 = vadd.f32 %v718, %v829
        %v880 = vadd.f32 %v719, %v834
        %v881 = vadd.f32 %v720, %v839
        %v882 = vadd.f32 %v721, %v844
        %v883 = vadd.f32 %v722, %v849
        %v884 = vadd.f32 %v723, %v854
        %v885 = vadd.f32 %v724, %v859
        %v886 = vadd.f32 %v725, %v864
        %v887 = vadd.f32 %v726, %v869
        %888 = vst [vmem:[#allocation2 + $0x80] sm:$0xff] %v872
        %889 = vst [vmem:[#allocation2 + $0x88] sm:$0xff] %v873
        %890 = vst [vmem:[#allocation2 + $0x90] sm:$0xff] %v874
        %891 = vst [vmem:[#allocation2 + $0x98] sm:$0xff] %v875
        %892 = vst [vmem:[#allocation2 + $0xa0] sm:$0xff] %v876
        %893 = vst [vmem:[#allocation2 + $0xa8] sm:$0xff] %v877
        %894 = vst [vmem:[#allocation2 + $0xb0] sm:$0xff] %v878
        %895 = vst [vmem:[#allocation2 + $0xb8] sm:$0xff] %v879
        %896 = vst [vmem:[#allocation2 + $0xc0] sm:$0xff] %v880
        %897 = vst [vmem:[#allocation2 + $0xc8] sm:$0xff] %v881
        %898 = vst [vmem:[#allocation2 + $0xd0] sm:$0xff] %v882
        %899 = vst [vmem:[#allocation2 + $0xd8] sm:$0xff] %v883
        %900 = vst [vmem:[#allocation2 + $0xe0] sm:$0xff] %v884
        %901 = vst [vmem:[#allocation2 + $0xe8] sm:$0xff] %v885
        %902 = vst [vmem:[#allocation2 + $0xf0] sm:$0xff] %v886
        %903 = vst [vmem:[#allocation2 + $0xf8] sm:$0xff] %v887
        %p904 = scmp.eq.s32.totalorder %s30, 1
        // Predicated region
        $region73: #{explain_model_forward.1} parent=47 // pred_check
          %p905 = pneg %p904
        $region74: #{explain_model_forward.1} parent=47 // pred_check_branch
          %907 = sbr.rel (%p905) target = $region76
        $region75: #{explain_model_forward.1} parent=47 // pred_region
          %v908 = vld [vmem:[#allocation2] sm:$0xff]
          %v909 = vld [vmem:[#allocation2 + $0x8] sm:$0xff]
          %v910 = vld [vmem:[#allocation2 + $0x10] sm:$0xff]
          %v911 = vld [vmem:[#allocation2 + $0x18] sm:$0xff]
          %v912 = vld [vmem:[#allocation2 + $0x20] sm:$0xff]
          %v913 = vld [vmem:[#allocation2 + $0x28] sm:$0xff]
          %v914 = vld [vmem:[#allocation2 + $0x30] sm:$0xff]
          %v915 = vld [vmem:[#allocation2 + $0x38] sm:$0xff]
          %v916 = vld [vmem:[#allocation2 + $0x40] sm:$0xff]
          %v917 = vld [vmem:[#allocation2 + $0x48] sm:$0xff]
          %v918 = vld [vmem:[#allocation2 + $0x50] sm:$0xff]
          %v919 = vld [vmem:[#allocation2 + $0x58] sm:$0xff]
          %v920 = vld [vmem:[#allocation2 + $0x60] sm:$0xff]
          %v921 = vld [vmem:[#allocation2 + $0x68] sm:$0xff]
          %v922 = vld [vmem:[#allocation2 + $0x70] sm:$0xff]
          %v923 = vld [vmem:[#allocation2 + $0x78] sm:$0xff]
          %v924 = vld [vmem:[#allocation2 + $0x80] sm:$0xff]
          %v925 = vld [vmem:[#allocation2 + $0x88] sm:$0xff]
          %v926 = vld [vmem:[#allocation2 + $0x90] sm:$0xff]
          %v927 = vld [vmem:[#allocation2 + $0x98] sm:$0xff]
          %v928 = vld [vmem:[#allocation2 + $0xa0] sm:$0xff]
          %v929 = vld [vmem:[#allocation2 + $0xa8] sm:$0xff]
          %v930 = vld [vmem:[#allocation2 + $0xb0] sm:$0xff]
          %v931 = vld [vmem:[#allocation2 + $0xb8] sm:$0xff]
          %v932 = vld [vmem:[#allocation2 + $0xc0] sm:$0xff]
          %v933 = vld [vmem:[#allocation2 + $0xc8] sm:$0xff]
          %v934 = vld [vmem:[#allocation2 + $0xd0] sm:$0xff]
          %v935 = vld [vmem:[#allocation2 + $0xd8] sm:$0xff]
          %v936 = vld [vmem:[#allocation2 + $0xe0] sm:$0xff]
          %v937 = vld [vmem:[#allocation2 + $0xe8] sm:$0xff]
          %v938 = vld [vmem:[#allocation2 + $0xf0] sm:$0xff]
          %v939 = vld [vmem:[#allocation2 + $0xf8] sm:$0xff]
          %v940 = vmax.f32 %v908, 0.0
          %v941 = vmax.f32 %v909, 0.0
          %v942 = vmax.f32 %v910, 0.0
          %v943 = vmax.f32 %v911, 0.0
          %v944 = vmax.f32 %v912, 0.0
          %v945 = vmax.f32 %v913, 0.0
          %v946 = vmax.f32 %v914, 0.0
          %v947 = vmax.f32 %v915, 0.0
          %v948 = vmax.f32 %v916, 0.0
          %v949 = vmax.f32 %v917, 0.0
          %v950 = vmax.f32 %v918, 0.0
          %v951 = vmax.f32 %v919, 0.0
          %v952 = vmax.f32 %v920, 0.0
          %v953 = vmax.f32 %v921, 0.0
          %v954 = vmax.f32 %v922, 0.0
          %v955 = vmax.f32 %v923, 0.0
          %v956 = vmax.f32 %v924, 0.0
          %v957 = vmax.f32 %v925, 0.0
          %v958 = vmax.f32 %v926, 0.0
          %v959 = vmax.f32 %v927, 0.0
          %v960 = vmax.f32 %v928, 0.0
          %v961 = vmax.f32 %v929, 0.0
          %v962 = vmax.f32 %v930, 0.0
          %v963 = vmax.f32 %v931, 0.0
          %v964 = vmax.f32 %v932, 0.0
          %v965 = vmax.f32 %v933, 0.0
          %v966 = vmax.f32 %v934, 0.0
          %v967 = vmax.f32 %v935, 0.0
          %v968 = vmax.f32 %v936, 0.0
          %v969 = vmax.f32 %v937, 0.0
          %v970 = vmax.f32 %v938, 0.0
          %v971 = vmax.f32 %v939, 0.0
          %v972 = vld [vmem:[#allocation7] sm:$0xff]
          %v973 = vld [vmem:[#allocation7 + $0x8] sm:$0xff]
          %v974 = vld [vmem:[#allocation7 + $0x10] sm:$0xff]
          %v975 = vld [vmem:[#allocation7 + $0x18] sm:$0xff]
          %v976 = vld [vmem:[#allocation7 + $0x20] sm:$0xff]
          %v977 = vld [vmem:[#allocation7 + $0x28] sm:$0xff]
          %v978 = vld [vmem:[#allocation7 + $0x30] sm:$0xff]
          %v979 = vld [vmem:[#allocation7 + $0x38] sm:$0xff]
          %v980 = vld [vmem:[#allocation7 + $0x40] sm:$0xff]
          %v981 = vld [vmem:[#allocation7 + $0x48] sm:$0xff]
          %v982 = vld [vmem:[#allocation7 + $0x50] sm:$0xff]
          %v983 = vld [vmem:[#allocation7 + $0x58] sm:$0xff]
          %v984 = vld [vmem:[#allocation7 + $0x60] sm:$0xff]
          %v985 = vld [vmem:[#allocation7 + $0x68] sm:$0xff]
          %v986 = vld [vmem:[#allocation7 + $0x70] sm:$0xff]
          %v987 = vld [vmem:[#allocation7 + $0x78] sm:$0xff]
          %v988 = vld [vmem:[#allocation7 + $0x80] sm:$0xff]
          %v989 = vld [vmem:[#allocation7 + $0x88] sm:$0xff]
          %v990 = vld [vmem:[#allocation7 + $0x90] sm:$0xff]
          %v991 = vld [vmem:[#allocation7 + $0x98] sm:$0xff]
          %v992 = vld [vmem:[#allocation7 + $0xa0] sm:$0xff]
          %v993 = vld [vmem:[#allocation7 + $0xa8] sm:$0xff]
          %v994 = vld [vmem:[#allocation7 + $0xb0] sm:$0xff]
          %v995 = vld [vmem:[#allocation7 + $0xb8] sm:$0xff]
          %v996 = vld [vmem:[#allocation7 + $0xc0] sm:$0xff]
          %v997 = vld [vmem:[#allocation7 + $0xc8] sm:$0xff]
          %v998 = vld [vmem:[#allocation7 + $0xd0] sm:$0xff]
          %v999 = vld [vmem:[#allocation7 + $0xd8] sm:$0xff]
          %v1000 = vld [vmem:[#allocation7 + $0xe0] sm:$0xff]
          %v1001 = vld [vmem:[#allocation7 + $0xe8] sm:$0xff]
          %v1002 = vld [vmem:[#allocation7 + $0xf0] sm:$0xff]
          %v1003 = vld [vmem:[#allocation7 + $0xf8] sm:$0xff]
          %v1004 = vld [vmem:[#allocation8] sm:$0x3]
          %v1006 = vlaneseq
          %v1007 = vshrl.u32 %v1006, 7
          %v1008 = vsub.s32 0, %v1007
          %v1009 = vrot.slane %v1004, %v1008
          %v1010 = vlaneseq
          %v1011 = vshrl.u32 %v1010, 7
          %v1012 = vsub.s32 1, %v1011
          %v1013 = vrot.slane %v1004, %v1012
          %1016 = vmatprep.subr.mxu0 %v973
          %1017 = vmatpush1.msra.mxu0 %v972
          %1018 = vmatprep.subr.mxu0 %v975
          %1019 = vmatpush1.msra.mxu0 %v974
          %1020 = vmatprep.subr.mxu0 %v977
          %1021 = vmatpush1.msra.mxu0 %v976
          %1022 = vmatprep.subr.mxu0 %v979
          %1023 = vmatpush1.msra.mxu0 %v978
          %1024 = vmatprep.subr.mxu0 %v981
          %1025 = vmatpush1.msra.mxu0 %v980
          %1026 = vmatprep.subr.mxu0 %v983
          %1027 = vmatpush1.msra.mxu0 %v982
          %1028 = vmatprep.subr.mxu0 %v985
          %1029 = vmatpush1.msra.mxu0 %v984
          %1030 = vmatprep.subr.mxu0 %v987
          %1031 = vmatpush1.msra.mxu0 %v986
          %1032 = vmatprep.subr.mxu0 %v989
          %1033 = vmatpush1.msra.mxu0 %v988
          %1034 = vmatprep.subr.mxu0 %v991
          %1035 = vmatpush1.msra.mxu0 %v990
          %1036 = vmatprep.subr.mxu0 %v993
          %1037 = vmatpush1.msra.mxu0 %v992
          %1038 = vmatprep.subr.mxu0 %v995
          %1039 = vmatpush1.msra.mxu0 %v994
          %1040 = vmatprep.subr.mxu0 %v997
          %1041 = vmatpush1.msra.mxu0 %v996
          %1042 = vmatprep.subr.mxu0 %v999
          %1043 = vmatpush1.msra.mxu0 %v998
          %1044 = vmatprep.subr.mxu0 %v1001
          %1045 = vmatpush1.msra.mxu0 %v1000
          %1046 = vmatprep.subr.mxu0 %v1003
          %1047 = vmatpush1.msra.mxu0 %v1002
          %1048 = vmatprep.subr.mxu0 0.0
          %1049 = vmatpush1.msra.mxu0 0.0
          %1050 = vmatprep.subr.mxu0 0.0
          %1051 = vmatpush1.msra.mxu0 0.0
          %1052 = vmatprep.subr.mxu0 0.0
          %1053 = vmatpush1.msra.mxu0 0.0
          %1054 = vmatprep.subr.mxu0 0.0
          %1055 = vmatpush1.msra.mxu0 0.0
          %1056 = vmatprep.subr.mxu0 0.0
          %1057 = vmatpush1.msra.mxu0 0.0
          %1058 = vmatprep.subr.mxu0 0.0
          %1059 = vmatpush1.msra.mxu0 0.0
          %1060 = vmatprep.subr.mxu0 0.0
          %1061 = vmatpush1.msra.mxu0 0.0
          %1062 = vmatprep.subr.mxu0 0.0
          %1063 = vmatpush1.msra.mxu0 0.0
          %1064 = vmatprep.subr.mxu0 0.0
          %1065 = vmatpush1.msra.mxu0 0.0
          %1066 = vmatprep.subr.mxu0 0.0
          %1067 = vmatpush1.msra.mxu0 0.0
          %1068 = vmatprep.subr.mxu0 0.0
          %1069 = vmatpush1.msra.mxu0 0.0
          %1070 = vmatprep.subr.mxu0 0.0
          %1071 = vmatpush1.msra.mxu0 0.0
          %1072 = vmatprep.subr.mxu0 0.0
          %1073 = vmatpush1.msra.mxu0 0.0
          %1074 = vmatprep.subr.mxu0 0.0
          %1075 = vmatpush1.msra.mxu0 0.0
          %1076 = vmatprep.subr.mxu0 0.0
          %1077 = vmatpush1.msra.mxu0 0.0
          %1078 = vmatprep.subr.mxu0 0.0
          %1079 = vmatpush1.msra.mxu0 0.0
          %1080 = vmatprep.mubr.f32.mxu0 0.0
          %1081 = vmatmul.mubr.f32.gmra.mrb[0].mxu0 %v940
          %v1082 = vpop.f32.mrb[0].mxu0
          %v1083 = vadd.f32 %v1009, %v1082
          %v1084 = vpop.f32.mrb[0].mxu0
          %v1085 = vadd.f32 %v1013, %v1084
          %1086 = vmatprep.mubr.f32.mxu0 0.0
          %1087 = vmatmul.mubr.f32.gmra.mrb[0].mxu0 %v941
          %v1088 = vpop.f32.mrb[0].mxu0
          %v1089 = vadd.f32 %v1009, %v1088
          %v1090 = vpop.f32.mrb[0].mxu0
          %v1091 = vadd.f32 %v1013, %v1090
          %1092 = vmatprep.mubr.f32.mxu0 0.0
          %1093 = vmatmul.mubr.f32.gmra.mrb[0].mxu0 %v942
          %v1094 = vpop.f32.mrb[0].mxu0
          %v1095 = vadd.f32 %v1009, %v1094
          %v1096 = vpop.f32.mrb[0].mxu0
          %v1097 = vadd.f32 %v1013, %v1096
          %1098 = vmatprep.mubr.f32.mxu0 0.0
          %1099 = vmatmul.mubr.f32.gmra.mrb[0].mxu0 %v943
          %v1100 = vpop.f32.mrb[0].mxu0
          %v1101 = vadd.f32 %v1009, %v1100
          %v1102 = vpop.f32.mrb[0].mxu0
          %v1103 = vadd.f32 %v1013, %v1102
          %1104 = vmatprep.mubr.f32.mxu0 0.0
          %1105 = vmatmul.mubr.f32.gmra.mrb[0].mxu0 %v944
          %v1106 = vpop.f32.mrb[0].mxu0
          %v1107 = vadd.f32 %v1009, %v1106
          %v1108 = vpop.f32.mrb[0].mxu0
          %v1109 = vadd.f32 %v1013, %v1108
          %1110 = vmatprep.mubr.f32.mxu0 0.0
          %1111 = vmatmul.mubr.f32.gmra.mrb[0].mxu0 %v945
          %v1112 = vpop.f32.mrb[0].mxu0
          %v1113 = vadd.f32 %v1009, %v1112
          %v1114 = vpop.f32.mrb[0].mxu0
          %v1115 = vadd.f32 %v1013, %v1114
          %1116 = vmatprep.mubr.f32.mxu0 0.0
          %1117 = vmatmul.mubr.f32.gmra.mrb[0].mxu0 %v946
          %v1118 = vpop.f32.mrb[0].mxu0
          %v1119 = vadd.f32 %v1009, %v1118
          %v1120 = vpop.f32.mrb[0].mxu0
          %v1121 = vadd.f32 %v1013, %v1120
          %1122 = vmatprep.mubr.f32.mxu0 0.0
          %1123 = vmatmul.mubr.f32.gmra.mrb[0].mxu0 %v947
          %v1124 = vpop.f32.mrb[0].mxu0
          %v1125 = vadd.f32 %v1009, %v1124
          %v1126 = vpop.f32.mrb[0].mxu0
          %v1127 = vadd.f32 %v1013, %v1126
          %1128 = vmatprep.mubr.f32.mxu0 0.0
          %1129 = vmatmul.mubr.f32.gmra.mrb[0].mxu0 %v948
          %v1130 = vpop.f32.mrb[0].mxu0
          %v1131 = vadd.f32 %v1009, %v1130
          %v1132 = vpop.f32.mrb[0].mxu0
          %v1133 = vadd.f32 %v1013, %v1132
          %1134 = vmatprep.mubr.f32.mxu0 0.0
          %1135 = vmatmul.mubr.f32.gmra.mrb[0].mxu0 %v949
          %v1136 = vpop.f32.mrb[0].mxu0
          %v1137 = vadd.f32 %v1009, %v1136
          %v1138 = vpop.f32.mrb[0].mxu0
          %v1139 = vadd.f32 %v1013, %v1138
          %1140 = vmatprep.mubr.f32.mxu0 0.0
          %1141 = vmatmul.mubr.f32.gmra.mrb[0].mxu0 %v950
          %v1142 = vpop.f32.mrb[0].mxu0
          %v1143 = vadd.f32 %v1009, %v1142
          %v1144 = vpop.f32.mrb[0].mxu0
          %v1145 = vadd.f32 %v1013, %v1144
          %1146 = vmatprep.mubr.f32.mxu0 0.0
          %1147 = vmatmul.mubr.f32.gmra.mrb[0].mxu0 %v951
          %v1148 = vpop.f32.mrb[0].mxu0
          %v1149 = vadd.f32 %v1009, %v1148
          %v1150 = vpop.f32.mrb[0].mxu0
          %v1151 = vadd.f32 %v1013, %v1150
          %1152 = vmatprep.mubr.f32.mxu0 0.0
          %1153 = vmatmul.mubr.f32.gmra.mrb[0].mxu0 %v952
          %v1154 = vpop.f32.mrb[0].mxu0
          %v1155 = vadd.f32 %v1009, %v1154
          %v1156 = vpop.f32.mrb[0].mxu0
          %v1157 = vadd.f32 %v1013, %v1156
          %1158 = vmatprep.mubr.f32.mxu0 0.0
          %1159 = vmatmul.mubr.f32.gmra.mrb[0].mxu0 %v953
          %v1160 = vpop.f32.mrb[0].mxu0
          %v1161 = vadd.f32 %v1009, %v1160
          %v1162 = vpop.f32.mrb[0].mxu0
          %v1163 = vadd.f32 %v1013, %v1162
          %1164 = vmatprep.mubr.f32.mxu0 0.0
          %1165 = vmatmul.mubr.f32.gmra.mrb[0].mxu0 %v954
          %v1166 = vpop.f32.mrb[0].mxu0
          %v1167 = vadd.f32 %v1009, %v1166
          %v1168 = vpop.f32.mrb[0].mxu0
          %v1169 = vadd.f32 %v1013, %v1168
          %1170 = vmatprep.mubr.f32.mxu0 0.0
          %1171 = vmatmul.mubr.f32.gmra.mrb[0].mxu0 %v955
          %v1172 = vpop.f32.mrb[0].mxu0
          %v1173 = vadd.f32 %v1009, %v1172
          %v1174 = vpop.f32.mrb[0].mxu0
          %v1175 = vadd.f32 %v1013, %v1174
          %1176 = vmatprep.mubr.f32.mxu0 0.0
          %1177 = vmatmul.mubr.f32.gmra.mrb[0].mxu0 %v956
          %v1178 = vpop.f32.mrb[0].mxu0
          %v1179 = vadd.f32 %v1009, %v1178
          %v1180 = vpop.f32.mrb[0].mxu0
          %v1181 = vadd.f32 %v1013, %v1180
          %1182 = vmatprep.mubr.f32.mxu0 0.0
          %1183 = vmatmul.mubr.f32.gmra.mrb[0].mxu0 %v957
          %v1184 = vpop.f32.mrb[0].mxu0
          %v1185 = vadd.f32 %v1009, %v1184
          %v1186 = vpop.f32.mrb[0].mxu0
          %v1187 = vadd.f32 %v1013, %v1186
          %1188 = vmatprep.mubr.f32.mxu0 0.0
          %1189 = vmatmul.mubr.f32.gmra.mrb[0].mxu0 %v958
          %v1190 = vpop.f32.mrb[0].mxu0
          %v1191 = vadd.f32 %v1009, %v1190
          %v1192 = vpop.f32.mrb[0].mxu0
          %v1193 = vadd.f32 %v1013, %v1192
          %1194 = vmatprep.mubr.f32.mxu0 0.0
          %1195 = vmatmul.mubr.f32.gmra.mrb[0].mxu0 %v959
          %v1196 = vpop.f32.mrb[0].mxu0
          %v1197 = vadd.f32 %v1009, %v1196
          %v1198 = vpop.f32.mrb[0].mxu0
          %v1199 = vadd.f32 %v1013, %v1198
          %1200 = vmatprep.mubr.f32.mxu0 0.0
          %1201 = vmatmul.mubr.f32.gmra.mrb[0].mxu0 %v960
          %v1202 = vpop.f32.mrb[0].mxu0
          %v1203 = vadd.f32 %v1009, %v1202
          %v1204 = vpop.f32.mrb[0].mxu0
          %v1205 = vadd.f32 %v1013, %v1204
          %1206 = vmatprep.mubr.f32.mxu0 0.0
          %1207 = vmatmul.mubr.f32.gmra.mrb[0].mxu0 %v961
          %v1208 = vpop.f32.mrb[0].mxu0
          %v1209 = vadd.f32 %v1009, %v1208
          %v1210 = vpop.f32.mrb[0].mxu0
          %v1211 = vadd.f32 %v1013, %v1210
          %1212 = vmatprep.mubr.f32.mxu0 0.0
          %1213 = vmatmul.mubr.f32.gmra.mrb[0].mxu0 %v962
          %v1214 = vpop.f32.mrb[0].mxu0
          %v1215 = vadd.f32 %v1009, %v1214
          %v1216 = vpop.f32.mrb[0].mxu0
          %v1217 = vadd.f32 %v1013, %v1216
          %1218 = vmatprep.mubr.f32.mxu0 0.0
          %1219 = vmatmul.mubr.f32.gmra.mrb[0].mxu0 %v963
          %v1220 = vpop.f32.mrb[0].mxu0
          %v1221 = vadd.f32 %v1009, %v1220
          %v1222 = vpop.f32.mrb[0].mxu0
          %v1223 = vadd.f32 %v1013, %v1222
          %1224 = vmatprep.mubr.f32.mxu0 0.0
          %1225 = vmatmul.mubr.f32.gmra.mrb[0].mxu0 %v964
          %v1226 = vpop.f32.mrb[0].mxu0
          %v1227 = vadd.f32 %v1009, %v1226
          %v1228 = vpop.f32.mrb[0].mxu0
          %v1229 = vadd.f32 %v1013, %v1228
          %1230 = vmatprep.mubr.f32.mxu0 0.0
          %1231 = vmatmul.mubr.f32.gmra.mrb[0].mxu0 %v965
          %v1232 = vpop.f32.mrb[0].mxu0
          %v1233 = vadd.f32 %v1009, %v1232
          %v1234 = vpop.f32.mrb[0].mxu0
          %v1235 = vadd.f32 %v1013, %v1234
          %1236 = vmatprep.mubr.f32.mxu0 0.0
          %1237 = vmatmul.mubr.f32.gmra.mrb[0].mxu0 %v966
          %v1238 = vpop.f32.mrb[0].mxu0
          %v1239 = vadd.f32 %v1009, %v1238
          %v1240 = vpop.f32.mrb[0].mxu0
          %v1241 = vadd.f32 %v1013, %v1240
          %1242 = vmatprep.mubr.f32.mxu0 0.0
          %1243 = vmatmul.mubr.f32.gmra.mrb[0].mxu0 %v967
          %v1244 = vpop.f32.mrb[0].mxu0
          %v1245 = vadd.f32 %v1009, %v1244
          %v1246 = vpop.f32.mrb[0].mxu0
          %v1247 = vadd.f32 %v1013, %v1246
          %1248 = vmatprep.mubr.f32.mxu0 0.0
          %1249 = vmatmul.mubr.f32.gmra.mrb[0].mxu0 %v968
          %v1250 = vpop.f32.mrb[0].mxu0
          %v1251 = vadd.f32 %v1009, %v1250
          %v1252 = vpop.f32.mrb[0].mxu0
          %v1253 = vadd.f32 %v1013, %v1252
          %1254 = vmatprep.mubr.f32.mxu0 0.0
          %1255 = vmatmul.mubr.f32.gmra.mrb[0].mxu0 %v969
          %v1256 = vpop.f32.mrb[0].mxu0
          %v1257 = vadd.f32 %v1009, %v1256
          %v1258 = vpop.f32.mrb[0].mxu0
          %v1259 = vadd.f32 %v1013, %v1258
          %1260 = vmatprep.mubr.f32.mxu0 0.0
          %1261 = vmatmul.mubr.f32.gmra.mrb[0].mxu0 %v970
          %v1262 = vpop.f32.mrb[0].mxu0
          %v1263 = vadd.f32 %v1009, %v1262
          %v1264 = vpop.f32.mrb[0].mxu0
          %v1265 = vadd.f32 %v1013, %v1264
          %1266 = vmatprep.mubr.f32.mxu0 0.0
          %1267 = vmatmul.mubr.f32.gmra.mrb[0].mxu0 %v971
          %v1268 = vpop.f32.mrb[0].mxu0
          %v1269 = vadd.f32 %v1009, %v1268
          %v1270 = vpop.f32.mrb[0].mxu0
          %v1271 = vadd.f32 %v1013, %v1270
          %1272 = vdwg.mxu0
          %v1273 = vmax.f32 %v1083, 0.0
          %v1274 = vmax.f32 %v1085, 0.0
          %v1275 = vmax.f32 %v1089, 0.0
          %v1276 = vmax.f32 %v1091, 0.0
          %v1277 = vmax.f32 %v1095, 0.0
          %v1278 = vmax.f32 %v1097, 0.0
          %v1279 = vmax.f32 %v1101, 0.0
          %v1280 = vmax.f32 %v1103, 0.0
          %v1281 = vmax.f32 %v1107, 0.0
          %v1282 = vmax.f32 %v1109, 0.0
          %v1283 = vmax.f32 %v1113, 0.0
          %v1284 = vmax.f32 %v1115, 0.0
          %v1285 = vmax.f32 %v1119, 0.0
          %v1286 = vmax.f32 %v1121, 0.0
          %v1287 = vmax.f32 %v1125, 0.0
          %v1288 = vmax.f32 %v1127, 0.0
          %v1289 = vmax.f32 %v1131, 0.0
          %v1290 = vmax.f32 %v1133, 0.0
          %v1291 = vmax.f32 %v1137, 0.0
          %v1292 = vmax.f32 %v1139, 0.0
          %v1293 = vmax.f32 %v1143, 0.0
          %v1294 = vmax.f32 %v1145, 0.0
          %v1295 = vmax.f32 %v1149, 0.0
          %v1296 = vmax.f32 %v1151, 0.0
          %v1297 = vmax.f32 %v1155, 0.0
          %v1298 = vmax.f32 %v1157, 0.0
          %v1299 = vmax.f32 %v1161, 0.0
          %v1300 = vmax.f32 %v1163, 0.0
          %v1301 = vmax.f32 %v1167, 0.0
          %v1302 = vmax.f32 %v1169, 0.0
          %v1303 = vmax.f32 %v1173, 0.0
          %v1304 = vmax.f32 %v1175, 0.0
          %v1305 = vmax.f32 %v1179, 0.0
          %v1306 = vmax.f32 %v1181, 0.0
          %v1307 = vmax.f32 %v1185, 0.0
          %v1308 = vmax.f32 %v1187, 0.0
          %v1309 = vmax.f32 %v1191, 0.0
          %v1310 = vmax.f32 %v1193, 0.0
          %v1311 = vmax.f32 %v1197, 0.0
          %v1312 = vmax.f32 %v1199, 0.0
          %v1313 = vmax.f32 %v1203, 0.0
          %v1314 = vmax.f32 %v1205, 0.0
          %v1315 = vmax.f32 %v1209, 0.0
          %v1316 = vmax.f32 %v1211, 0.0
          %v1317 = vmax.f32 %v1215, 0.0
          %v1318 = vmax.f32 %v1217, 0.0
          %v1319 = vmax.f32 %v1221, 0.0
          %v1320 = vmax.f32 %v1223, 0.0
          %v1321 = vmax.f32 %v1227, 0.0
          %v1322 = vmax.f32 %v1229, 0.0
          %v1323 = vmax.f32 %v1233, 0.0
          %v1324 = vmax.f32 %v1235, 0.0
          %v1325 = vmax.f32 %v1239, 0.0
          %v1326 = vmax.f32 %v1241, 0.0
          %v1327 = vmax.f32 %v1245, 0.0
          %v1328 = vmax.f32 %v1247, 0.0
          %v1329 = vmax.f32 %v1251, 0.0
          %v1330 = vmax.f32 %v1253, 0.0
          %v1331 = vmax.f32 %v1257, 0.0
          %v1332 = vmax.f32 %v1259, 0.0
          %v1333 = vmax.f32 %v1263, 0.0
          %v1334 = vmax.f32 %v1265, 0.0
          %v1335 = vmax.f32 %v1269, 0.0
          %v1336 = vmax.f32 %v1271, 0.0
          %v1337 = vld [vmem:[#allocation10] sm:$0xff]
          %v1338 = vld [vmem:[#allocation10 + $0x8] sm:$0xff]
          %v1339 = vld [vmem:[#allocation10 + $0x10] sm:$0xff]
          %v1340 = vld [vmem:[#allocation10 + $0x18] sm:$0xff]
          %v1341 = vld [vmem:[#allocation10 + $0x20] sm:$0xff]
          %v1342 = vld [vmem:[#allocation10 + $0x28] sm:$0xff]
          %v1343 = vld [vmem:[#allocation10 + $0x30] sm:$0xff]
          %v1344 = vld [vmem:[#allocation10 + $0x38] sm:$0xff]
          %v1345 = vld [vmem:[#allocation10 + $0x40] sm:$0xff]
          %v1346 = vld [vmem:[#allocation10 + $0x48] sm:$0xff]
          %v1347 = vld [vmem:[#allocation10 + $0x50] sm:$0xff]
          %v1348 = vld [vmem:[#allocation10 + $0x58] sm:$0xff]
          %v1349 = vld [vmem:[#allocation10 + $0x60] sm:$0xff]
          %v1350 = vld [vmem:[#allocation10 + $0x68] sm:$0xff]
          %v1351 = vld [vmem:[#allocation10 + $0x70] sm:$0xff]
          %v1352 = vld [vmem:[#allocation10 + $0x78] sm:$0xff]
          %v1353 = vld [vmem:[#allocation10 + $0x80] sm:$0xff]
          %v1354 = vld [vmem:[#allocation10 + $0x88] sm:$0xff]
          %v1355 = vld [vmem:[#allocation10 + $0x90] sm:$0xff]
          %v1356 = vld [vmem:[#allocation10 + $0x98] sm:$0xff]
          %v1357 = vld [vmem:[#allocation10 + $0xa0] sm:$0xff]
          %v1358 = vld [vmem:[#allocation10 + $0xa8] sm:$0xff]
          %v1359 = vld [vmem:[#allocation10 + $0xb0] sm:$0xff]
          %v1360 = vld [vmem:[#allocation10 + $0xb8] sm:$0xff]
          %v1361 = vld [vmem:[#allocation10 + $0xc0] sm:$0xff]
          %v1362 = vld [vmem:[#allocation10 + $0xc8] sm:$0xff]
          %v1363 = vld [vmem:[#allocation10 + $0xd0] sm:$0xff]
          %v1364 = vld [vmem:[#allocation10 + $0xd8] sm:$0xff]
          %v1365 = vld [vmem:[#allocation10 + $0xe0] sm:$0xff]
          %v1366 = vld [vmem:[#allocation10 + $0xe8] sm:$0xff]
          %v1367 = vld [vmem:[#allocation10 + $0xf0] sm:$0xff]
          %v1368 = vld [vmem:[#allocation10 + $0xf8] sm:$0xff]
          %v1369 = vld [vmem:[%s6] sm:$0x1]
          %v1371 = vlaneseq
          %v1372 = vshrl.u32 %v1371, 7
          %v1373 = vsub.s32 0, %v1372
          %v1374 = vrot.slane %v1369, %v1373
          %1376 = vmatprep.subr.mxu0 0.0
          %1377 = vmatpush1.msra.mxu0 %v1337
          %1378 = vmatprep.subr.mxu0 0.0
          %1379 = vmatpush1.msra.mxu0 %v1338
          %1380 = vmatprep.subr.mxu0 0.0
          %1381 = vmatpush1.msra.mxu0 %v1339
          %1382 = vmatprep.subr.mxu0 0.0
          %1383 = vmatpush1.msra.mxu0 %v1340
          %1384 = vmatprep.subr.mxu0 0.0
          %1385 = vmatpush1.msra.mxu0 %v1341
          %1386 = vmatprep.subr.mxu0 0.0
          %1387 = vmatpush1.msra.mxu0 %v1342
          %1388 = vmatprep.subr.mxu0 0.0
          %1389 = vmatpush1.msra.mxu0 %v1343
          %1390 = vmatprep.subr.mxu0 0.0
          %1391 = vmatpush1.msra.mxu0 %v1344
          %1392 = vmatprep.subr.mxu0 0.0
          %1393 = vmatpush1.msra.mxu0 %v1345
          %1394 = vmatprep.subr.mxu0 0.0
          %1395 = vmatpush1.msra.mxu0 %v1346
          %1396 = vmatprep.subr.mxu0 0.0
          %1397 = vmatpush1.msra.mxu0 %v1347
          %1398 = vmatprep.subr.mxu0 0.0
          %1399 = vmatpush1.msra.mxu0 %v1348
          %1400 = vmatprep.subr.mxu0 0.0
          %1401 = vmatpush1.msra.mxu0 %v1349
          %1402 = vmatprep.subr.mxu0 0.0
          %1403 = vmatpush1.msra.mxu0 %v1350
          %1404 = vmatprep.subr.mxu0 0.0
          %1405 = vmatpush1.msra.mxu0 %v1351
          %1406 = vmatprep.subr.mxu0 0.0
          %1407 = vmatpush1.msra.mxu0 %v1352
          %1408 = vmatprep.subr.mxu0 0.0
          %1409 = vmatpush1.msra.mxu0 %v1353
          %1410 = vmatprep.subr.mxu0 0.0
          %1411 = vmatpush1.msra.mxu0 %v1354
          %1412 = vmatprep.subr.mxu0 0.0
          %1413 = vmatpush1.msra.mxu0 %v1355
          %1414 = vmatprep.subr.mxu0 0.0
          %1415 = vmatpush1.msra.mxu0 %v1356
          %1416 = vmatprep.subr.mxu0 0.0
          %1417 = vmatpush1.msra.mxu0 %v1357
          %1418 = vmatprep.subr.mxu0 0.0
          %1419 = vmatpush1.msra.mxu0 %v1358
          %1420 = vmatprep.subr.mxu0 0.0
          %1421 = vmatpush1.msra.mxu0 %v1359
          %1422 = vmatprep.subr.mxu0 0.0
          %1423 = vmatpush1.msra.mxu0 %v1360
          %1424 = vmatprep.subr.mxu0 0.0
          %1425 = vmatpush1.msra.mxu0 %v1361
          %1426 = vmatprep.subr.mxu0 0.0
          %1427 = vmatpush1.msra.mxu0 %v1362
          %1428 = vmatprep.subr.mxu0 0.0
          %1429 = vmatpush1.msra.mxu0 %v1363
          %1430 = vmatprep.subr.mxu0 0.0
          %1431 = vmatpush1.msra.mxu0 %v1364
          %1432 = vmatprep.subr.mxu0 0.0
          %1433 = vmatpush1.msra.mxu0 %v1365
          %1434 = vmatprep.subr.mxu0 0.0
          %1435 = vmatpush1.msra.mxu0 %v1366
          %1436 = vmatprep.subr.mxu0 0.0
          %1437 = vmatpush1.msra.mxu0 %v1367
          %1438 = vmatprep.subr.mxu0 0.0
          %1439 = vmatpush1.msra.mxu0 %v1368
          %1440 = vmatprep.mubr.f32.mxu0 %v1274
          %1441 = vmatmul.mubr.f32.gmra.mrb[0].mxu0 %v1273
          %v1442 = vpop.f32.mrb[0].mxu0
          %v1443 = vadd.f32 %v1374, %v1442
          %v1444 = vpop.f32.mrb[0].mxu0
          %1445 = vmatprep.mubr.f32.mxu0 %v1276
          %1446 = vmatmul.mubr.f32.gmra.mrb[0].mxu0 %v1275
          %v1447 = vpop.f32.mrb[0].mxu0
          %v1448 = vadd.f32 %v1374, %v1447
          %v1449 = vpop.f32.mrb[0].mxu0
          %1450 = vmatprep.mubr.f32.mxu0 %v1278
          %1451 = vmatmul.mubr.f32.gmra.mrb[0].mxu0 %v1277
          %v1452 = vpop.f32.mrb[0].mxu0
          %v1453 = vadd.f32 %v1374, %v1452
          %v1454 = vpop.f32.mrb[0].mxu0
          %1455 = vmatprep.mubr.f32.mxu0 %v1280
          %1456 = vmatmul.mubr.f32.gmra.mrb[0].mxu0 %v1279
          %v1457 = vpop.f32.mrb[0].mxu0
          %v1458 = vadd.f32 %v1374, %v1457
          %v1459 = vpop.f32.mrb[0].mxu0
          %1460 = vmatprep.mubr.f32.mxu0 %v1282
          %1461 = vmatmul.mubr.f32.gmra.mrb[0].mxu0 %v1281
          %v1462 = vpop.f32.mrb[0].mxu0
          %v1463 = vadd.f32 %v1374, %v1462
          %v1464 = vpop.f32.mrb[0].mxu0
          %1465 = vmatprep.mubr.f32.mxu0 %v1284
          %1466 = vmatmul.mubr.f32.gmra.mrb[0].mxu0 %v1283
          %v1467 = vpop.f32.mrb[0].mxu0
          %v1468 = vadd.f32 %v1374, %v1467
          %v1469 = vpop.f32.mrb[0].mxu0
          %1470 = vmatprep.mubr.f32.mxu0 %v1286
          %1471 = vmatmul.mubr.f32.gmra.mrb[0].mxu0 %v1285
          %v1472 = vpop.f32.mrb[0].mxu0
          %v1473 = vadd.f32 %v1374, %v1472
          %v1474 = vpop.f32.mrb[0].mxu0
          %1475 = vmatprep.mubr.f32.mxu0 %v1288
          %1476 = vmatmul.mubr.f32.gmra.mrb[0].mxu0 %v1287
          %v1477 = vpop.f32.mrb[0].mxu0
          %v1478 = vadd.f32 %v1374, %v1477
          %v1479 = vpop.f32.mrb[0].mxu0
          %1480 = vmatprep.mubr.f32.mxu0 %v1290
          %1481 = vmatmul.mubr.f32.gmra.mrb[0].mxu0 %v1289
          %v1482 = vpop.f32.mrb[0].mxu0
          %v1483 = vadd.f32 %v1374, %v1482
          %v1484 = vpop.f32.mrb[0].mxu0
          %1485 = vmatprep.mubr.f32.mxu0 %v1292
          %1486 = vmatmul.mubr.f32.gmra.mrb[0].mxu0 %v1291
          %v1487 = vpop.f32.mrb[0].mxu0
          %v1488 = vadd.f32 %v1374, %v1487
          %v1489 = vpop.f32.mrb[0].mxu0
          %1490 = vmatprep.mubr.f32.mxu0 %v1294
          %1491 = vmatmul.mubr.f32.gmra.mrb[0].mxu0 %v1293
          %v1492 = vpop.f32.mrb[0].mxu0
          %v1493 = vadd.f32 %v1374, %v1492
          %v1494 = vpop.f32.mrb[0].mxu0
          %1495 = vmatprep.mubr.f32.mxu0 %v1296
          %1496 = vmatmul.mubr.f32.gmra.mrb[0].mxu0 %v1295
          %v1497 = vpop.f32.mrb[0].mxu0
          %v1498 = vadd.f32 %v1374, %v1497
          %v1499 = vpop.f32.mrb[0].mxu0
          %1500 = vmatprep.mubr.f32.mxu0 %v1298
          %1501 = vmatmul.mubr.f32.gmra.mrb[0].mxu0 %v1297
          %v1502 = vpop.f32.mrb[0].mxu0
          %v1503 = vadd.f32 %v1374, %v1502
          %v1504 = vpop.f32.mrb[0].mxu0
          %1505 = vmatprep.mubr.f32.mxu0 %v1300
          %1506 = vmatmul.mubr.f32.gmra.mrb[0].mxu0 %v1299
          %v1507 = vpop.f32.mrb[0].mxu0
          %v1508 = vadd.f32 %v1374, %v1507
          %v1509 = vpop.f32.mrb[0].mxu0
          %1510 = vmatprep.mubr.f32.mxu0 %v1302
          %1511 = vmatmul.mubr.f32.gmra.mrb[0].mxu0 %v1301
          %v1512 = vpop.f32.mrb[0].mxu0
          %v1513 = vadd.f32 %v1374, %v1512
          %v1514 = vpop.f32.mrb[0].mxu0
          %1515 = vmatprep.mubr.f32.mxu0 %v1304
          %1516 = vmatmul.mubr.f32.gmra.mrb[0].mxu0 %v1303
          %v1517 = vpop.f32.mrb[0].mxu0
          %v1518 = vadd.f32 %v1374, %v1517
          %v1519 = vpop.f32.mrb[0].mxu0
          %1520 = vmatprep.mubr.f32.mxu0 %v1306
          %1521 = vmatmul.mubr.f32.gmra.mrb[0].mxu0 %v1305
          %v1522 = vpop.f32.mrb[0].mxu0
          %v1523 = vadd.f32 %v1374, %v1522
          %v1524 = vpop.f32.mrb[0].mxu0
          %1525 = vmatprep.mubr.f32.mxu0 %v1308
          %1526 = vmatmul.mubr.f32.gmra.mrb[0].mxu0 %v1307
          %v1527 = vpop.f32.mrb[0].mxu0
          %v1528 = vadd.f32 %v1374, %v1527
          %v1529 = vpop.f32.mrb[0].mxu0
          %1530 = vmatprep.mubr.f32.mxu0 %v1310
          %1531 = vmatmul.mubr.f32.gmra.mrb[0].mxu0 %v1309
          %v1532 = vpop.f32.mrb[0].mxu0
          %v1533 = vadd.f32 %v1374, %v1532
          %v1534 = vpop.f32.mrb[0].mxu0
          %1535 = vmatprep.mubr.f32.mxu0 %v1312
          %1536 = vmatmul.mubr.f32.gmra.mrb[0].mxu0 %v1311
          %v1537 = vpop.f32.mrb[0].mxu0
          %v1538 = vadd.f32 %v1374, %v1537
          %v1539 = vpop.f32.mrb[0].mxu0
          %1540 = vmatprep.mubr.f32.mxu0 %v1314
          %1541 = vmatmul.mubr.f32.gmra.mrb[0].mxu0 %v1313
          %v1542 = vpop.f32.mrb[0].mxu0
          %v1543 = vadd.f32 %v1374, %v1542
          %v1544 = vpop.f32.mrb[0].mxu0
          %1545 = vmatprep.mubr.f32.mxu0 %v1316
          %1546 = vmatmul.mubr.f32.gmra.mrb[0].mxu0 %v1315
          %v1547 = vpop.f32.mrb[0].mxu0
          %v1548 = vadd.f32 %v1374, %v1547
          %v1549 = vpop.f32.mrb[0].mxu0
          %1550 = vmatprep.mubr.f32.mxu0 %v1318
          %1551 = vmatmul.mubr.f32.gmra.mrb[0].mxu0 %v1317
          %v1552 = vpop.f32.mrb[0].mxu0
          %v1553 = vadd.f32 %v1374, %v1552
          %v1554 = vpop.f32.mrb[0].mxu0
          %1555 = vmatprep.mubr.f32.mxu0 %v1320
          %1556 = vmatmul.mubr.f32.gmra.mrb[0].mxu0 %v1319
          %v1557 = vpop.f32.mrb[0].mxu0
          %v1558 = vadd.f32 %v1374, %v1557
          %v1559 = vpop.f32.mrb[0].mxu0
          %1560 = vmatprep.mubr.f32.mxu0 %v1322
          %1561 = vmatmul.mubr.f32.gmra.mrb[0].mxu0 %v1321
          %v1562 = vpop.f32.mrb[0].mxu0
          %v1563 = vadd.f32 %v1374, %v1562
          %v1564 = vpop.f32.mrb[0].mxu0
          %1565 = vmatprep.mubr.f32.mxu0 %v1324
          %1566 = vmatmul.mubr.f32.gmra.mrb[0].mxu0 %v1323
          %v1567 = vpop.f32.mrb[0].mxu0
          %v1568 = vadd.f32 %v1374, %v1567
          %v1569 = vpop.f32.mrb[0].mxu0
          %1570 = vmatprep.mubr.f32.mxu0 %v1326
          %1571 = vmatmul.mubr.f32.gmra.mrb[0].mxu0 %v1325
          %v1572 = vpop.f32.mrb[0].mxu0
          %v1573 = vadd.f32 %v1374, %v1572
          %v1574 = vpop.f32.mrb[0].mxu0
          %1575 = vmatprep.mubr.f32.mxu0 %v1328
          %1576 = vmatmul.mubr.f32.gmra.mrb[0].mxu0 %v1327
          %v1577 = vpop.f32.mrb[0].mxu0
          %v1578 = vadd.f32 %v1374, %v1577
          %v1579 = vpop.f32.mrb[0].mxu0
          %1580 = vmatprep.mubr.f32.mxu0 %v1330
          %1581 = vmatmul.mubr.f32.gmra.mrb[0].mxu0 %v1329
          %v1582 = vpop.f32.mrb[0].mxu0
          %v1583 = vadd.f32 %v1374, %v1582
          %v1584 = vpop.f32.mrb[0].mxu0
          %1585 = vmatprep.mubr.f32.mxu0 %v1332
          %1586 = vmatmul.mubr.f32.gmra.mrb[0].mxu0 %v1331
          %v1587 = vpop.f32.mrb[0].mxu0
          %v1588 = vadd.f32 %v1374, %v1587
          %v1589 = vpop.f32.mrb[0].mxu0
          %1590 = vmatprep.mubr.f32.mxu0 %v1334
          %1591 = vmatmul.mubr.f32.gmra.mrb[0].mxu0 %v1333
          %v1592 = vpop.f32.mrb[0].mxu0
          %v1593 = vadd.f32 %v1374, %v1592
          %v1594 = vpop.f32.mrb[0].mxu0
          %1595 = vmatprep.mubr.f32.mxu0 %v1336
          %1596 = vmatmul.mubr.f32.gmra.mrb[0].mxu0 %v1335
          %v1597 = vpop.f32.mrb[0].mxu0
          %v1598 = vadd.f32 %v1374, %v1597
          %v1599 = vpop.f32.mrb[0].mxu0
          %1600 = vdwg.mxu0
          %v1601 = vsub.f32 %v1443, %v1523
          %v1602 = vsub.f32 %v1448, %v1528
          %v1603 = vsub.f32 %v1453, %v1533
          %v1604 = vsub.f32 %v1458, %v1538
          %v1605 = vsub.f32 %v1463, %v1543
          %v1606 = vsub.f32 %v1468, %v1548
          %v1607 = vsub.f32 %v1473, %v1553
          %v1608 = vsub.f32 %v1478, %v1558
          %v1609 = vsub.f32 %v1483, %v1563
          %v1610 = vsub.f32 %v1488, %v1568
          %v1611 = vsub.f32 %v1493, %v1573
          %v1612 = vsub.f32 %v1498, %v1578
          %v1613 = vsub.f32 %v1503, %v1583
          %v1614 = vsub.f32 %v1508, %v1588
          %v1615 = vsub.f32 %v1513, %v1593
          %v1616 = vsub.f32 %v1518, %v1598
          %v1617 = vmul.f32 %v1601, 1.442695
          %v1618 = vpow.pop %v1617
          %v1619 = vmul.f32 %v1602, 1.442695
          %v1620 = vpow.pop %v1619
          %v1621 = vmul.f32 %v1603, 1.442695
          %v1622 = vpow.pop %v1621
          %v1623 = vmul.f32 %v1604, 1.442695
          %v1624 = vpow.pop %v1623
          %v1625 = vmul.f32 %v1605, 1.442695
          %v1626 = vpow.pop %v1625
          %v1627 = vmul.f32 %v1606, 1.442695
          %v1628 = vpow.pop %v1627
          %v1629 = vmul.f32 %v1607, 1.442695
          %v1630 = vpow.pop %v1629
          %v1631 = vmul.f32 %v1608, 1.442695
          %v1632 = vpow.pop %v1631
          %v1633 = vmul.f32 %v1609, 1.442695
          %v1634 = vpow.pop %v1633
          %v1635 = vmul.f32 %v1610, 1.442695
          %v1636 = vpow.pop %v1635
          %v1637 = vmul.f32 %v1611, 1.442695
          %v1638 = vpow.pop %v1637
          %v1639 = vmul.f32 %v1612, 1.442695
          %v1640 = vpow.pop %v1639
          %v1641 = vmul.f32 %v1613, 1.442695
          %v1642 = vpow.pop %v1641
          %v1643 = vmul.f32 %v1614, 1.442695
          %v1644 = vpow.pop %v1643
          %v1645 = vmul.f32 %v1615, 1.442695
          %v1646 = vpow.pop %v1645
          %v1647 = vmul.f32 %v1616, 1.442695
          %v1648 = vpow.pop %v1647
          %v1649 = vadd.f32 %v1618, 1.0
          %v1650 = vadd.f32 %v1620, 1.0
          %v1651 = vadd.f32 %v1622, 1.0
          %v1652 = vadd.f32 %v1624, 1.0
          %v1653 = vadd.f32 %v1626, 1.0
          %v1654 = vadd.f32 %v1628, 1.0
          %v1655 = vadd.f32 %v1630, 1.0
          %v1656 = vadd.f32 %v1632, 1.0
          %v1657 = vadd.f32 %v1634, 1.0
          %v1658 = vadd.f32 %v1636, 1.0
          %v1659 = vadd.f32 %v1638, 1.0
          %v1660 = vadd.f32 %v1640, 1.0
          %v1661 = vadd.f32 %v1642, 1.0
          %v1662 = vadd.f32 %v1644, 1.0
          %v1663 = vadd.f32 %v1646, 1.0
          %v1664 = vadd.f32 %v1648, 1.0
          %v1665 = vrcp.pop %v1649
          %v1666 = vrcp.pop %v1650
          %v1667 = vrcp.pop %v1651
          %v1668 = vrcp.pop %v1652
          %v1669 = vrcp.pop %v1653
          %v1670 = vrcp.pop %v1654
          %v1671 = vrcp.pop %v1655
          %v1672 = vrcp.pop %v1656
          %v1673 = vrcp.pop %v1657
          %v1674 = vrcp.pop %v1658
          %v1675 = vrcp.pop %v1659
          %v1676 = vrcp.pop %v1660
          %v1677 = vrcp.pop %v1661
          %v1678 = vrcp.pop %v1662
          %v1679 = vrcp.pop %v1663
          %v1680 = vrcp.pop %v1664
          %1697 = vrot.lane.b32.xlu0 %v1443, 1
          %v1698 = vpop.permute.xlu0 %1697
          %1699 = vrot.lane.b32.xlu0 %v1448, 1
          %v1700 = vpop.permute.xlu0 %1699
          %1701 = vrot.lane.b32.xlu0 %v1453, 1
          %v1702 = vpop.permute.xlu0 %1701
          %1703 = vrot.lane.b32.xlu0 %v1458, 1
          %v1704 = vpop.permute.xlu0 %1703
          %1705 = vrot.lane.b32.xlu0 %v1463, 1
          %v1706 = vpop.permute.xlu0 %1705
          %1707 = vrot.lane.b32.xlu0 %v1468, 1
          %v1708 = vpop.permute.xlu0 %1707
          %1709 = vrot.lane.b32.xlu0 %v1473, 1
          %v1710 = vpop.permute.xlu0 %1709
          %1711 = vrot.lane.b32.xlu0 %v1478, 1
          %v1712 = vpop.permute.xlu0 %1711
          %1713 = vrot.lane.b32.xlu0 %v1483, 1
          %v1714 = vpop.permute.xlu0 %1713
          %1715 = vrot.lane.b32.xlu0 %v1488, 1
          %v1716 = vpop.permute.xlu0 %1715
          %1717 = vrot.lane.b32.xlu0 %v1493, 1
          %v1718 = vpop.permute.xlu0 %1717
          %1719 = vrot.lane.b32.xlu0 %v1498, 1
          %v1720 = vpop.permute.xlu0 %1719
          %1721 = vrot.lane.b32.xlu0 %v1503, 1
          %v1722 = vpop.permute.xlu0 %1721
          %1723 = vrot.lane.b32.xlu0 %v1508, 1
          %v1724 = vpop.permute.xlu0 %1723
          %1725 = vrot.lane.b32.xlu0 %v1513, 1
          %v1726 = vpop.permute.xlu0 %1725
          %1727 = vrot.lane.b32.xlu0 %v1518, 1
          %v1728 = vpop.permute.xlu0 %1727
          %v1745 = vmul.f32 %v1665, %v1698
          %v1746 = vmul.f32 %v1666, %v1700
          %v1747 = vmul.f32 %v1667, %v1702
          %v1748 = vmul.f32 %v1668, %v1704
          %v1749 = vmul.f32 %v1669, %v1706
          %v1750 = vmul.f32 %v1670, %v1708
          %v1751 = vmul.f32 %v1671, %v1710
          %v1752 = vmul.f32 %v1672, %v1712
          %v1753 = vmul.f32 %v1673, %v1714
          %v1754 = vmul.f32 %v1674, %v1716
          %v1755 = vmul.f32 %v1675, %v1718
          %v1756 = vmul.f32 %v1676, %v1720
          %v1757 = vmul.f32 %v1677, %v1722
          %v1758 = vmul.f32 %v1678, %v1724
          %v1759 = vmul.f32 %v1679, %v1726
          %v1760 = vmul.f32 %v1680, %v1728
          %v1761 = vsub.f32 1.0, %v1665
          %v1762 = vsub.f32 1.0, %v1666
          %v1763 = vsub.f32 1.0, %v1667
          %v1764 = vsub.f32 1.0, %v1668
          %v1765 = vsub.f32 1.0, %v1669
          %v1766 = vsub.f32 1.0, %v1670
          %v1767 = vsub.f32 1.0, %v1671
          %v1768 = vsub.f32 1.0, %v1672
          %v1769 = vsub.f32 1.0, %v1673
          %v1770 = vsub.f32 1.0, %v1674
          %v1771 = vsub.f32 1.0, %v1675
          %v1772 = vsub.f32 1.0, %v1676
          %v1773 = vsub.f32 1.0, %v1677
          %v1774 = vsub.f32 1.0, %v1678
          %v1775 = vsub.f32 1.0, %v1679
          %v1776 = vsub.f32 1.0, %v1680
          %1793 = vrot.lane.b32.xlu0 %v1523, 1
          %v1794 = vpop.permute.xlu0 %1793
          %1795 = vrot.lane.b32.xlu0 %v1528, 1
          %v1796 = vpop.permute.xlu0 %1795
          %1797 = vrot.lane.b32.xlu0 %v1533, 1
          %v1798 = vpop.permute.xlu0 %1797
          %1799 = vrot.lane.b32.xlu0 %v1538, 1
          %v1800 = vpop.permute.xlu0 %1799
          %1801 = vrot.lane.b32.xlu0 %v1543, 1
          %v1802 = vpop.permute.xlu0 %1801
          %1803 = vrot.lane.b32.xlu0 %v1548, 1
          %v1804 = vpop.permute.xlu0 %1803
          %1805 = vrot.lane.b32.xlu0 %v1553, 1
          %v1806 = vpop.permute.xlu0 %1805
          %1807 = vrot.lane.b32.xlu0 %v1558, 1
          %v1808 = vpop.permute.xlu0 %1807
          %1809 = vrot.lane.b32.xlu0 %v1563, 1
          %v1810 = vpop.permute.xlu0 %1809
          %1811 = vrot.lane.b32.xlu0 %v1568, 1
          %v1812 = vpop.permute.xlu0 %1811
          %1813 = vrot.lane.b32.xlu0 %v1573, 1
          %v1814 = vpop.permute.xlu0 %1813
          %1815 = vrot.lane.b32.xlu0 %v1578, 1
          %v1816 = vpop.permute.xlu0 %1815
          %1817 = vrot.lane.b32.xlu0 %v1583, 1
          %v1818 = vpop.permute.xlu0 %1817
          %1819 = vrot.lane.b32.xlu0 %v1588, 1
          %v1820 = vpop.permute.xlu0 %1819
          %1821 = vrot.lane.b32.xlu0 %v1593, 1
          %v1822 = vpop.permute.xlu0 %1821
          %1823 = vrot.lane.b32.xlu0 %v1598, 1
          %v1824 = vpop.permute.xlu0 %1823
          %v1841 = vmul.f32 %v1761, %v1794
          %v1842 = vmul.f32 %v1762, %v1796
          %v1843 = vmul.f32 %v1763, %v1798
          %v1844 = vmul.f32 %v1764, %v1800
          %v1845 = vmul.f32 %v1765, %v1802
          %v1846 = vmul.f32 %v1766, %v1804
          %v1847 = vmul.f32 %v1767, %v1806
          %v1848 = vmul.f32 %v1768, %v1808
          %v1849 = vmul.f32 %v1769, %v1810
          %v1850 = vmul.f32 %v1770, %v1812
          %v1851 = vmul.f32 %v1771, %v1814
          %v1852 = vmul.f32 %v1772, %v1816
          %v1853 = vmul.f32 %v1773, %v1818
          %v1854 = vmul.f32 %v1774, %v1820
          %v1855 = vmul.f32 %v1775, %v1822
          %v1856 = vmul.f32 %v1776, %v1824
          %v1857 = vadd.f32 %v1745, %v1841
          %v1858 = vadd.f32 %v1746, %v1842
          %v1859 = vadd.f32 %v1747, %v1843
          %v1860 = vadd.f32 %v1748, %v1844
          %v1861 = vadd.f32 %v1749, %v1845
          %v1862 = vadd.f32 %v1750, %v1846
          %v1863 = vadd.f32 %v1751, %v1847
          %v1864 = vadd.f32 %v1752, %v1848
          %v1865 = vadd.f32 %v1753, %v1849
          %v1866 = vadd.f32 %v1754, %v1850
          %v1867 = vadd.f32 %v1755, %v1851
          %v1868 = vadd.f32 %v1756, %v1852
          %v1869 = vadd.f32 %v1757, %v1853
          %v1870 = vadd.f32 %v1758, %v1854
          %v1871 = vadd.f32 %v1759, %v1855
          %v1872 = vadd.f32 %v1760, %v1856
          %1889 = vrot.lane.b32.xlu0 %v1857, 127
          %v1890 = vpop.permute.xlu0 %1889
          %1891 = vrot.lane.b32.xlu0 %v1858, 127
          %v1892 = vpop.permute.xlu0 %1891
          %1893 = vrot.lane.b32.xlu0 %v1859, 127
          %v1894 = vpop.permute.xlu0 %1893
          %1895 = vrot.lane.b32.xlu0 %v1860, 127
          %v1896 = vpop.permute.xlu0 %1895
          %1897 = vrot.lane.b32.xlu0 %v1861, 127
          %v1898 = vpop.permute.xlu0 %1897
          %1899 = vrot.lane.b32.xlu0 %v1862, 127
          %v1900 = vpop.permute.xlu0 %1899
          %1901 = vrot.lane.b32.xlu0 %v1863, 127
          %v1902 = vpop.permute.xlu0 %1901
          %1903 = vrot.lane.b32.xlu0 %v1864, 127
          %v1904 = vpop.permute.xlu0 %1903
          %1905 = vrot.lane.b32.xlu0 %v1865, 127
          %v1906 = vpop.permute.xlu0 %1905
          %1907 = vrot.lane.b32.xlu0 %v1866, 127
          %v1908 = vpop.permute.xlu0 %1907
          %1909 = vrot.lane.b32.xlu0 %v1867, 127
          %v1910 = vpop.permute.xlu0 %1909
          %1911 = vrot.lane.b32.xlu0 %v1868, 127
          %v1912 = vpop.permute.xlu0 %1911
          %1913 = vrot.lane.b32.xlu0 %v1869, 127
          %v1914 = vpop.permute.xlu0 %1913
          %1915 = vrot.lane.b32.xlu0 %v1870, 127
          %v1916 = vpop.permute.xlu0 %1915
          %1917 = vrot.lane.b32.xlu0 %v1871, 127
          %v1918 = vpop.permute.xlu0 %1917
          %1919 = vrot.lane.b32.xlu0 %v1872, 127
          %v1920 = vpop.permute.xlu0 %1919
          %vm1937 = vcmask 7168
          %1938 = vst.msk [vmem:[%s397] sm:$0xff] %vm1937, %v1890
          %1939 = vst.msk [vmem:[%s397 + $0x8] sm:$0xff] %vm1937, %v1892
          %1940 = vst.msk [vmem:[%s397 + $0x10] sm:$0xff] %vm1937, %v1894
          %1941 = vst.msk [vmem:[%s397 + $0x18] sm:$0xff] %vm1937, %v1896
          %1942 = vst.msk [vmem:[%s397 + $0x20] sm:$0xff] %vm1937, %v1898
          %1943 = vst.msk [vmem:[%s397 + $0x28] sm:$0xff] %vm1937, %v1900
          %1944 = vst.msk [vmem:[%s397 + $0x30] sm:$0xff] %vm1937, %v1902
          %1945 = vst.msk [vmem:[%s397 + $0x38] sm:$0xff] %vm1937, %v1904
          %1946 = vst.msk [vmem:[%s397 + $0x40] sm:$0xff] %vm1937, %v1906
          %1947 = vst.msk [vmem:[%s397 + $0x48] sm:$0xff] %vm1937, %v1908
          %1948 = vst.msk [vmem:[%s397 + $0x50] sm:$0xff] %vm1937, %v1910
          %1949 = vst.msk [vmem:[%s397 + $0x58] sm:$0xff] %vm1937, %v1912
          %1950 = vst.msk [vmem:[%s397 + $0x60] sm:$0xff] %vm1937, %v1914
          %1951 = vst.msk [vmem:[%s397 + $0x68] sm:$0xff] %vm1937, %v1916
          %1952 = vst.msk [vmem:[%s397 + $0x70] sm:$0xff] %vm1937, %v1918
          %1953 = vst.msk [vmem:[%s397 + $0x78] sm:$0xff] %vm1937, %v1920
        $region76: #{explain_model_forward.1} parent=47 // pred_fallthru
          _
        %s1954 = smul.u32 16, %s29
        %p1955 = scmp.lt.s32.totalorder %s1954, 31
        %s1956 = scalar_select %p1955, %s1954, 31
        %s1957 = smul.addr %s1956, 8
        %s1958 = scalar_lea.vmem %s7, %s1957
        // Predicated region
        $region77: #{explain_model_forward.1} parent=47 // pred_check
          %p1959 = pneg %p214
        $region78: #{explain_model_forward.1} parent=47 // pred_check_branch
          %1961 = sbr.rel (%p1959) target = $region80
        $region79: #{explain_model_forward.1} parent=47 // pred_region
          %s1962 = smul.u32 16, %s29
        $region80: #{explain_model_forward.1} parent=47 // pred_fallthru
          _
      $region48: #{explain_model_forward.1} parent=5 // pred_fallthru
        _
      %p1963 = scmp.le.s32.totalorder 2, %s20
      // Predicated region
      $region81: #{explain_model_forward.1} parent=5 // pred_check
        %p1964 = pneg %p1963
      $region82: #{explain_model_forward.1} parent=5 // pred_check_branch
        %1966 = sbr.rel (%p1964) target = $region84
      $region83: #{explain_model_forward.1} parent=5 // pred_region
        %s1967 = ssub.s32 %s20, 2
        // Predicated region
        $region85: #{explain_model_forward.1} parent=83 // pred_check
          %p1968 = pneg %p220
        $region86: #{explain_model_forward.1} parent=83 // pred_check_branch
          %1970 = sbr.rel (%p1968) target = $region88
        $region87: #{explain_model_forward.1} parent=83 // pred_region
          %s1971 = smul.u32 16, %s31
          %p1972 = scmp.lt.s32.totalorder %s1971, 31
          %s1973 = scalar_select %p1972, %s1971, 31
          %s1974 = smul.addr %s1973, 8
          %s1975 = scalar_lea.vmem %s7, %s1974
        $region88: #{explain_model_forward.1} parent=83 // pred_fallthru
          _
      $region84: #{explain_model_forward.1} parent=5 // pred_fallthru
        _
    $region6: #{explain_model_forward.1} parent=1 // loop_footer
      %s24 = sadd.s32 1, %s20
    $region7: #{explain_model_forward.1} parent=1 // loop_footer_branch
      %19 = sbr.rel target = $region3
    $region8: #{explain_model_forward.1} parent=1 // loop_exit
      _
    %1976 = vsyncpa [#allocation4], 1
    %s1977 = scalar_lea.sflag [#allocation4], 1
    %1978 = vsyncpa %s1977, 1
    %1979 = vsyncpa [#allocation6], 1
    %s1980 = scalar_lea.sflag [#allocation6], 1
    %1981 = vsyncpa %s1980, 1
    %1982 = vsyncpa [#allocation9], 1

</llo_original>
